<compile_context>
chip_gen: v5e
topology: v5e:2x2
jax: 0.10.0
libtpu: 0.0.40
codegen_flags: <defaults>
</compile_context>

<pallas_src>
import jax
import jax.numpy as jnp
from jax.experimental import pallas as pl
from jax.experimental.pallas import tpu as pltpu

_HEAD_W = 128  # lane-dense packed head output width


def _round_up(x, m):
    return -(-x // m) * m


# ---------------------------------------------------------------------------
# Kernel
# ---------------------------------------------------------------------------
def mtl_synergy_kernel(
    # per-batch-tile inputs (bf16)
    d12_ref, c_ref,
    # drug_cell_line_layer (BatchNorm folded into w0*/b0); weights bf16, biases f32
    w0d_ref, w0c_ref, b0_ref, w1_ref, b1_ref,
    # merged first Linear of sensitivity_layer ([ws0 | wy0a]) and synergy_layer
    wmix1_ref, wmix2_ref, bmix_ref,
    # merged second Linear of both heads' trunks (block-diagonal, 256-wide lanes)
    wstage2_ref, bstage2_ref,
    # all four output heads packed into one lane-dense matmul
    wheads_ref, bheads_ref,
    # packed output slab (TB, 128) in bf16
    out_ref,
):
    f32 = jnp.float32
    bf16 = jnp.bfloat16
    _, TB, Dd = d12_ref.shape
    h0 = w0d_ref.shape[1]

    # --- drug_cell_line_layer: Linear(+folded eval-BN) + ReLU, Linear + ReLU ---
    # cell-line matmul computed ONCE and shared by both drug paths via broadcast.
    c_pre = jnp.dot(c_ref[...], w0c_ref[...], preferred_element_type=f32)   # (TB, h0)

    # d1/d2 arrive pre-stacked along the leading axis -> one MXU pass per layer.
    d12 = d12_ref[...].reshape(2 * TB, Dd)                                  # bf16
    pre = jnp.dot(d12, w0d_ref[...], preferred_element_type=f32)            # (2TB, h0)
    pre = pre.reshape(2, TB, h0) + c_pre[None] + b0_ref[...]
    h = jnp.maximum(pre, 0.0)                                               # (2, TB, h0) f32

    hc = jnp.maximum(
        jnp.dot(h.astype(bf16).reshape(2 * TB, h0), w1_ref[...],
                preferred_element_type=f32) + b1_ref[...], 0.0)             # (2TB, h1) f32
    d1_c = hc[:TB].astype(bf16)                                             # (TB, h1)
    d2_c = hc[TB:].astype(bf16)                                             # (TB, h1)

    # --- sensitivity_layer L0 + synergy_layer L0 merged along (128-padded) lanes ---
    # mixed[:, :h3] = ReLU(d1_c @ ws0 + bs0)
    # mixed[:, h3:h3+h2] = ReLU(d1_c @ wy0a + d2_c @ wy0b + by0)   (Dropout = id in eval)
    mixed = jnp.maximum(
        jnp.dot(d1_c, wmix1_ref[...], preferred_element_type=f32)
        + jnp.dot(d2_c, wmix2_ref[...], preferred_element_type=f32)
        + bmix_ref[...], 0.0)                                               # (TB, MIX_W)

    # --- sensitivity L1 + synergy L1 merged (block-diagonal, lanes padded to 256) ---
    # combo[:, :64] = sensitivity features, combo[:, 64:192] = synergy features.
    combo = jnp.maximum(
        jnp.dot(mixed.astype(bf16), wstage2_ref[...], preferred_element_type=f32)
        + bstage2_ref[...], 0.0)                                            # (TB, 256)

    # --- all four output heads as one lane-dense matmul into a (TB, 128) bf16 slab ---
    # col 0: synergy_out_1, cols 1:3: synergy_out_2 logits,
    # col 3: sensitivity_out_1, cols 4:6: sensitivity_out_2 logits, rest zero.
    out_ref[...] = (jnp.dot(combo.astype(bf16), wheads_ref[...],
                            preferred_element_type=f32)
                    + bheads_ref[...]).astype(out_ref.dtype)


# ---------------------------------------------------------------------------
# Wrapper
# ---------------------------------------------------------------------------
_WEIGHT_ORDER = (
    "w0d", "w0c", "b0", "w1", "b1",
    "wmix1", "wmix2", "bmix",
    "wstage2", "bstage2",
    "wheads", "bheads",
)


def mtl_synergy_forward(d1, d2, c_exp, kparams, *, block_b=512):
    """Runs the fused kernel. Returns (syn1, sen1, syn2, sen2) like the PyTorch module."""
    f32 = jnp.float32
    bf16 = jnp.bfloat16
    B, Dd = d1.shape
    Dc = c_exp.shape[1]

    # Batch tile: multiple of 16 sublanes (bf16 inputs); capped so the grid has
    # >=2 steps when possible (megacore on v7x needs >=2 parallel grid steps).
    block_b = max(16, _round_up(block_b, 16))
    B16 = _round_up(B, 16)
    TB = min(block_b, B16)
    if B16 >= 32:
        TB = min(TB, _round_up(-(-B16 // 2), 16))
    Bp = _round_up(B, TB)

    # Pre-stack d1/d2 -> (2, Bp, Dd): no per-step in-kernel concatenate; bf16 IO.
    d12 = jnp.stack([d1, d2], axis=0).astype(bf16)
    c = c_exp.astype(bf16)
    if Bp != B:
        d12 = jnp.pad(d12, ((0, 0), (0, Bp - B), (0, 0)))
        c = jnp.pad(c, ((0, Bp - B), (0, 0)))

    weights = [kparams[k] for k in _WEIGHT_ORDER]

    def const_spec(arr):
        # Resident weight: constant index_map, single-buffered (no double-buffer VMEM).
        return pl.BlockSpec(arr.shape, lambda i: (0,) * arr.ndim,
                            pipeline_mode=pl.Buffered(1))

    in_specs = (
        [pl.BlockSpec((2, TB, Dd), lambda i: (0, i, 0)),
         pl.BlockSpec((TB, Dc), lambda i: (i, 0))]
        + [const_spec(w) for w in weights])

    # Explicit scoped-VMEM budget: resident weights (single-buffered) +
    # double-buffered bf16 batch tiles + f32 intermediates, with headroom;
    # floored at the default 32 MiB and capped at 64 MiB (v7x-safe).
    h0 = kparams["w0d"].shape[1]
    h1 = kparams["w1"].shape[1]
    mix_w = kparams["wmix1"].shape[1]
    s2_w = kparams["wstage2"].shape[1]
    weight_bytes = sum(int(w.size) * w.dtype.itemsize for w in weights)
    tile_bytes = 2 * 2 * (2 * TB * Dd + TB * Dc + TB * _HEAD_W)            # bf16, double-buffered
    interm_bytes = 4 * TB * (3 * h0 + 2 * h1 + mix_w + s2_w + _HEAD_W)     # f32 intermediates
    vmem_limit = int(min(64 << 20,
                         max(32 << 20,
                             2 * (weight_bytes + tile_bytes + interm_bytes) + (4 << 20))))

    out = pl.pallas_call(
        mtl_synergy_kernel,
        out_shape=jax.ShapeDtypeStruct((Bp, _HEAD_W), bf16),
        grid=(Bp // TB,),
        in_specs=in_specs,
        out_specs=pl.BlockSpec((TB, _HEAD_W), lambda i: (i, 0)),
        compiler_params=pltpu.CompilerParams(
            dimension_semantics=("parallel",),
            vmem_limit_bytes=vmem_limit),
    )(d12, c, *weights)

    # Slice the packed logits (padded rows dropped) and do the cheap 2-class
    # softmaxes in f32 in the wrapper.
    out = out[:B].astype(f32)
    syn1 = out[:, 0]
    sen1 = out[:, 3]
    syn2 = jax.nn.softmax(out[:, 1:3], axis=1)
    sen2 = jax.nn.softmax(out[:, 4:6], axis=1)
    return syn1, sen1, syn2, sen2


# ---------------------------------------------------------------------------
# Parameter construction / packing
# ---------------------------------------------------------------------------
def make_natural_params(key, drug_dim, cell_dim, hidden_neurons):
    """'PyTorch-like' parameters (weights stored [in, out]); eval-mode BN stats."""
    h0, h1, h2, h3 = hidden_neurons
    input_dim = drug_dim + cell_dim
    f32 = jnp.float32
    ks = jax.random.split(key, 16)

    def lin(k, fan_in, fan_out):
        kw, kb = jax.random.split(k)
        w = jax.random.normal(kw, (fan_in, fan_out), f32) * (1.0 / jnp.sqrt(fan_in))
        b = jax.random.normal(kb, (1, fan_out), f32) * 0.01
        return w, b

    w0, b0 = lin(ks[0], input_dim, h0)
    w1, b1 = lin(ks[1], h0, h1)
    wy0, by0 = lin(ks[2], 2 * h1, h2)
    wy1, by1 = lin(ks[3], h2, 128)
    ws0, bs0 = lin(ks[4], h1, h3)
    ws1, bs1 = lin(ks[5], h3, 64)
    wso1, bso1 = lin(ks[6], 128, 1)
    wso2, bso2 = lin(ks[7], 128, 2)
    wse1, bse1 = lin(ks[8], 64, 1)
    wse2, bse2 = lin(ks[9], 64, 2)

    bn_gamma = 1.0 + 0.1 * jax.random.normal(ks[10], (h0,), f32)
    bn_beta = 0.05 * jax.random.normal(ks[11], (h0,), f32)
    bn_mean = 0.1 * jax.random.normal(ks[12], (h0,), f32)
    bn_var = 1.0 + 0.2 * jax.random.uniform(ks[13], (h0,), f32)

    return dict(
        w0=w0, b0=b0, bn_gamma=bn_gamma, bn_beta=bn_beta, bn_mean=bn_mean, bn_var=bn_var,
        w1=w1, b1=b1,
        wy0=wy0, by0=by0, wy1=wy1, by1=by1,
        ws0=ws0, bs0=bs0, ws1=ws1, bs1=bs1,
        wso1=wso1, bso1=bso1, wso2=wso2, bso2=bso2,
        wse1=wse1, bse1=bse1, wse2=wse2, bse2=bse2,
    )


def pack_params(p, drug_dim, eps=1e-5):
    """Fold eval-BN into layer 0, split/merge/lane-pad weights, cast to bf16."""
    f32 = jnp.float32
    bf16 = jnp.bfloat16
    h1 = p["w1"].shape[1]
    h2 = p["wy0"].shape[1]
    h3 = p["ws0"].shape[1]
    SEN_W, SYN_W = 64, 128
    MIX_W = _round_up(h3 + h2, 128)       # lane-padded merged L0 output width
    S2_W = _round_up(SEN_W + SYN_W, 128)  # 192 -> 256 (lane-dense)

    # --- BatchNorm (eval) folded into the first Linear ---
    scale = p["bn_gamma"] / jnp.sqrt(p["bn_var"] + eps)            # (h0,)
    w0f = p["w0"] * scale[None, :]
    b0f = (p["b0"] - p["bn_mean"][None, :]) * scale[None, :] + p["bn_beta"][None, :]
    w0d, w0c = w0f[:drug_dim], w0f[drug_dim:]

    # --- merged first Linears: [ws0 | wy0a] on d1_c, [0 | wy0b] on d2_c (padded) ---
    wy0a, wy0b = p["wy0"][:h1], p["wy0"][h1:]
    wmix1 = jnp.zeros((h1, MIX_W), f32)
    wmix1 = wmix1.at[:, :h3].set(p["ws0"]).at[:, h3:h3 + h2].set(wy0a)
    wmix2 = jnp.zeros((h1, MIX_W), f32).at[:, h3:h3 + h2].set(wy0b)
    bmix = jnp.zeros((1, MIX_W), f32)
    bmix = bmix.at[:, :h3].set(p["bs0"]).at[:, h3:h3 + h2].set(p["by0"])

    # --- merged second Linears (block-diagonal): combo = [sen(64) | syn(128) | pad] ---
    wstage2 = jnp.zeros((MIX_W, S2_W), f32)
    wstage2 = wstage2.at[:h3, :SEN_W].set(p["ws1"])
    wstage2 = wstage2.at[h3:h3 + h2, SEN_W:SEN_W + SYN_W].set(p["wy1"])
    bstage2 = jnp.zeros((1, S2_W), f32)
    bstage2 = bstage2.at[:, :SEN_W].set(p["bs1"]).at[:, SEN_W:SEN_W + SYN_W].set(p["by1"])

    # --- packed output heads: one lane-dense (S2_W, 128) matmul ---
    wheads = jnp.zeros((S2_W, _HEAD_W), f32)
    wheads = wheads.at[SEN_W:SEN_W + SYN_W, 0:1].set(p["wso1"])    # synergy_out_1
    wheads = wheads.at[SEN_W:SEN_W + SYN_W, 1:3].set(p["wso2"])    # synergy_out_2 logits
    wheads = wheads.at[:SEN_W, 3:4].set(p["wse1"])                 # sensitivity_out_1
    wheads = wheads.at[:SEN_W, 4:6].set(p["wse2"])                 # sensitivity_out_2 logits
    bheads = jnp.zeros((1, _HEAD_W), f32)
    bheads = bheads.at[:, 0:1].set(p["bso1"]).at[:, 1:3].set(p["bso2"])
    bheads = bheads.at[:, 3:4].set(p["bse1"]).at[:, 4:6].set(p["bse2"])

    # Weights in bf16 (f32 MXU accumulation in the kernel); biases stay f32 (VPU adds).
    return dict(
        w0d=w0d.astype(bf16), w0c=w0c.astype(bf16), b0=b0f,
        w1=p["w1"].astype(bf16), b1=p["b1"],
        wmix1=wmix1.astype(bf16), wmix2=wmix2.astype(bf16), bmix=bmix,
        wstage2=wstage2.astype(bf16), bstage2=bstage2,
        wheads=wheads.astype(bf16), bheads=bheads,
    )


# ---------------------------------------------------------------------------
# Pure-JAX reference (mirrors the PyTorch module in eval mode, full f32)
# ---------------------------------------------------------------------------
def reference_forward(d1, d2, c_exp, p, eps=1e-5):
    def bn(x):
        return ((x - p["bn_mean"]) / jnp.sqrt(p["bn_var"] + eps)) * p["bn_gamma"] + p["bn_beta"]

    def dcl(drug):
        x = jnp.concatenate([drug, c_exp], axis=1)
        h = jnp.maximum(bn(x @ p["w0"] + p["b0"]), 0.0)
        return jnp.maximum(h @ p["w1"] + p["b1"], 0.0)

    d1_c, d2_c = dcl(d1), dcl(d2)
    sen = jnp.maximum(
        jnp.maximum(d1_c @ p["ws0"] + p["bs0"], 0.0) @ p["ws1"] + p["bs1"], 0.0)
    syn_in = jnp.concatenate([d1_c, d2_c], axis=1)
    syn = jnp.maximum(
        jnp.maximum(syn_in @ p["wy0"] + p["by0"], 0.0) @ p["wy1"] + p["by1"], 0.0)
    syn1 = (syn @ p["wso1"] + p["bso1"])[:, 0]
    sen1 = (sen @ p["wse1"] + p["bse1"])[:, 0]
    syn2 = jax.nn.softmax(syn @ p["wso2"] + p["bso2"], axis=1)
    sen2 = jax.nn.softmax(sen @ p["wse2"] + p["bse2"], axis=1)
    return syn1, sen1, syn2, sen2


# ---------------------------------------------------------------------------
# Smoke test
# ---------------------------------------------------------------------------
if __name__ == "__main__":
    B = 24                      # not a multiple of the tile -> exercises padding; 2 grid steps
    drug_dim, cell_dim = 16, 24
    hidden_neurons = [64, 32, 64, 32]

    key = jax.random.PRNGKey(0)
    k_d1, k_d2, k_c, k_p = jax.random.split(key, 4)
    d1 = jax.random.normal(k_d1, (B, drug_dim), jnp.float32)
    d2 = jax.random.normal(k_d2, (B, drug_dim), jnp.float32)
    c_exp = jax.random.normal(k_c, (B, cell_dim), jnp.float32)

    natural = make_natural_params(k_p, drug_dim, cell_dim, hidden_neurons)
    kparams = pack_params(natural, drug_dim)

    outs = mtl_synergy_forward(d1, d2, c_exp, kparams)   # default block_b=512, TB auto-derived
    outs = jax.block_until_ready(outs)

    refs = reference_forward(d1, d2, c_exp, natural)
    for o, r in zip(outs, refs):
        assert o.shape == r.shape and o.dtype == r.dtype
        # bf16 weights/activations with f32 accumulation -> loosened tolerances.
        assert jnp.allclose(o, r, rtol=5e-2, atol=5e-2)

    print("KERNEL_OK")
</pallas_src>

<mosaic_0001>
module attributes {stable_mosaic.version = 11 : i64} {
  func.func @mtl_synergy_kernel(%arg0: i32, %arg1: memref<2x16x16xbf16, #tpu.memory_space<vmem>>, %arg2: memref<16x24xbf16, #tpu.memory_space<vmem>>, %arg3: memref<16x64xbf16, #tpu.memory_space<vmem>>, %arg4: memref<24x64xbf16, #tpu.memory_space<vmem>>, %arg5: memref<1x64xf32, #tpu.memory_space<vmem>>, %arg6: memref<64x32xbf16, #tpu.memory_space<vmem>>, %arg7: memref<1x32xf32, #tpu.memory_space<vmem>>, %arg8: memref<32x128xbf16, #tpu.memory_space<vmem>>, %arg9: memref<32x128xbf16, #tpu.memory_space<vmem>>, %arg10: memref<1x128xf32, #tpu.memory_space<vmem>>, %arg11: memref<128x256xbf16, #tpu.memory_space<vmem>>, %arg12: memref<1x256xf32, #tpu.memory_space<vmem>>, %arg13: memref<256x128xbf16, #tpu.memory_space<vmem>>, %arg14: memref<1x128xf32, #tpu.memory_space<vmem>>, %arg15: memref<16x128xbf16, #tpu.memory_space<vmem>>) attributes {dimension_semantics = [#tpu.dimension_semantics<parallel>], iteration_bounds = array<i64: 2>, scalar_prefetch = 0 : i64, scratch_operands = 0 : i64, tpu.core_type = #tpu.core_type<tc>, window_params = [{transform_indices = @transform_0, window_bounds = array<i64: 2, 16, 16>}, {transform_indices = @transform_1, window_bounds = array<i64: 16, 24>}, {pipeline_mode = #tpu.pipeline_mode<synchronous>, transform_indices = @transform_2, window_bounds = array<i64: 16, 64>}, {pipeline_mode = #tpu.pipeline_mode<synchronous>, transform_indices = @transform_3, window_bounds = array<i64: 24, 64>}, {pipeline_mode = #tpu.pipeline_mode<synchronous>, transform_indices = @transform_4, window_bounds = array<i64: 1, 64>}, {pipeline_mode = #tpu.pipeline_mode<synchronous>, transform_indices = @transform_5, window_bounds = array<i64: 64, 32>}, {pipeline_mode = #tpu.pipeline_mode<synchronous>, transform_indices = @transform_6, window_bounds = array<i64: 1, 32>}, {pipeline_mode = #tpu.pipeline_mode<synchronous>, transform_indices = @transform_7, window_bounds = array<i64: 32, 128>}, {pipeline_mode = #tpu.pipeline_mode<synchronous>, transform_indices = @transform_8, window_bounds = array<i64: 32, 128>}, {pipeline_mode = #tpu.pipeline_mode<synchronous>, transform_indices = @transform_9, window_bounds = array<i64: 1, 128>}, {pipeline_mode = #tpu.pipeline_mode<synchronous>, transform_indices = @transform_10, window_bounds = array<i64: 128, 256>}, {pipeline_mode = #tpu.pipeline_mode<synchronous>, transform_indices = @transform_11, window_bounds = array<i64: 1, 256>}, {pipeline_mode = #tpu.pipeline_mode<synchronous>, transform_indices = @transform_12, window_bounds = array<i64: 256, 128>}, {pipeline_mode = #tpu.pipeline_mode<synchronous>, transform_indices = @transform_13, window_bounds = array<i64: 1, 128>}, {transform_indices = @transform_14, window_bounds = array<i64: 16, 128>}]} {
    %c0 = arith.constant 0 : index
    %c0_0 = arith.constant 0 : index
    %0 = vector.load %arg2[%c0, %c0_0] : memref<16x24xbf16, #tpu.memory_space<vmem>>, vector<16x24xbf16>
    %c0_1 = arith.constant 0 : index
    %c0_2 = arith.constant 0 : index
    %1 = vector.load %arg4[%c0_1, %c0_2] : memref<24x64xbf16, #tpu.memory_space<vmem>>, vector<24x64xbf16>
    %cst = arith.constant dense<0.000000e+00> : vector<16x64xf32>
    %2 = tpu.matmul %0, %1, %cst {dimension_numbers = #tpu.dot_dimension_numbers<[1], [0], [0], [1], [0, 0, 1, 1], [], []>} : vector<16x24xbf16>, vector<24x64xbf16>, vector<16x64xf32> -> vector<16x64xf32>
    %c0_3 = arith.constant 0 : index
    %c0_4 = arith.constant 0 : index
    %c0_5 = arith.constant 0 : index
    %3 = vector.load %arg1[%c0_3, %c0_4, %c0_5] : memref<2x16x16xbf16, #tpu.memory_space<vmem>>, vector<2x16x16xbf16>
    %4 = vector.shape_cast %3 : vector<2x16x16xbf16> to vector<32x16xbf16>
    %c0_6 = arith.constant 0 : index
    %c0_7 = arith.constant 0 : index
    %5 = vector.load %arg3[%c0_6, %c0_7] : memref<16x64xbf16, #tpu.memory_space<vmem>>, vector<16x64xbf16>
    %cst_8 = arith.constant dense<0.000000e+00> : vector<32x64xf32>
    %6 = tpu.matmul %4, %5, %cst_8 {dimension_numbers = #tpu.dot_dimension_numbers<[1], [0], [0], [1], [0, 0, 1, 1], [], []>} : vector<32x16xbf16>, vector<16x64xbf16>, vector<32x64xf32> -> vector<32x64xf32>
    %7 = vector.shape_cast %6 : vector<32x64xf32> to vector<2x16x64xf32>
    %8 = vector.shape_cast %2 : vector<16x64xf32> to vector<1x16x64xf32>
    %9 = vector.broadcast %8 : vector<1x16x64xf32> to vector<2x16x64xf32>
    %10 = arith.addf %7, %9 : vector<2x16x64xf32>
    %c0_9 = arith.constant 0 : index
    %c0_10 = arith.constant 0 : index
    %11 = vector.load %arg5[%c0_9, %c0_10] : memref<1x64xf32, #tpu.memory_space<vmem>>, vector<1x64xf32>
    %12 = vector.shape_cast %11 : vector<1x64xf32> to vector<1x1x64xf32>
    %13 = vector.broadcast %12 : vector<1x1x64xf32> to vector<2x16x64xf32>
    %14 = arith.addf %10, %13 : vector<2x16x64xf32>
    %cst_11 = arith.constant 0.000000e+00 : f32
    %15 = vector.broadcast %cst_11 : f32 to vector<2x16x64xf32>
    %16 = arith.maximumf %14, %15 : vector<2x16x64xf32>
    %17 = arith.truncf %16 : vector<2x16x64xf32> to vector<2x16x64xbf16>
    %18 = vector.shape_cast %17 : vector<2x16x64xbf16> to vector<32x64xbf16>
    %c0_12 = arith.constant 0 : index
    %c0_13 = arith.constant 0 : index
    %19 = vector.load %arg6[%c0_12, %c0_13] : memref<64x32xbf16, #tpu.memory_space<vmem>>, vector<64x32xbf16>
    %cst_14 = arith.constant dense<0.000000e+00> : vector<32x32xf32>
    %20 = tpu.matmul %18, %19, %cst_14 {dimension_numbers = #tpu.dot_dimension_numbers<[1], [0], [0], [1], [0, 0, 1, 1], [], []>} : vector<32x64xbf16>, vector<64x32xbf16>, vector<32x32xf32> -> vector<32x32xf32>
    %c0_15 = arith.constant 0 : index
    %c0_16 = arith.constant 0 : index
    %21 = vector.load %arg7[%c0_15, %c0_16] : memref<1x32xf32, #tpu.memory_space<vmem>>, vector<1x32xf32>
    %22 = vector.broadcast %21 : vector<1x32xf32> to vector<32x32xf32>
    %23 = arith.addf %20, %22 : vector<32x32xf32>
    %cst_17 = arith.constant 0.000000e+00 : f32
    %24 = vector.broadcast %cst_17 : f32 to vector<32x32xf32>
    %25 = arith.maximumf %23, %24 : vector<32x32xf32>
    %26 = vector.extract_strided_slice %25 {offsets = [0, 0], sizes = [16, 32], strides = [1, 1]} : vector<32x32xf32> to vector<16x32xf32>
    %27 = arith.truncf %26 : vector<16x32xf32> to vector<16x32xbf16>
    %28 = vector.extract_strided_slice %25 {offsets = [16, 0], sizes = [16, 32], strides = [1, 1]} : vector<32x32xf32> to vector<16x32xf32>
    %29 = arith.truncf %28 : vector<16x32xf32> to vector<16x32xbf16>
    %c0_18 = arith.constant 0 : index
    %c0_19 = arith.constant 0 : index
    %30 = vector.load %arg8[%c0_18, %c0_19] : memref<32x128xbf16, #tpu.memory_space<vmem>>, vector<32x128xbf16>
    %cst_20 = arith.constant dense<0.000000e+00> : vector<16x128xf32>
    %31 = tpu.matmul %27, %30, %cst_20 {dimension_numbers = #tpu.dot_dimension_numbers<[1], [0], [0], [1], [0, 0, 1, 1], [], []>} : vector<16x32xbf16>, vector<32x128xbf16>, vector<16x128xf32> -> vector<16x128xf32>
    %c0_21 = arith.constant 0 : index
    %c0_22 = arith.constant 0 : index
    %32 = vector.load %arg9[%c0_21, %c0_22] : memref<32x128xbf16, #tpu.memory_space<vmem>>, vector<32x128xbf16>
    %cst_23 = arith.constant dense<0.000000e+00> : vector<16x128xf32>
    %33 = tpu.matmul %29, %32, %cst_23 {dimension_numbers = #tpu.dot_dimension_numbers<[1], [0], [0], [1], [0, 0, 1, 1], [], []>} : vector<16x32xbf16>, vector<32x128xbf16>, vector<16x128xf32> -> vector<16x128xf32>
    %34 = arith.addf %31, %33 : vector<16x128xf32>
    %c0_24 = arith.constant 0 : index
    %c0_25 = arith.constant 0 : index
    %35 = vector.load %arg10[%c0_24, %c0_25] : memref<1x128xf32, #tpu.memory_space<vmem>>, vector<1x128xf32>
    %36 = vector.broadcast %35 : vector<1x128xf32> to vector<16x128xf32>
    %37 = arith.addf %34, %36 : vector<16x128xf32>
    %cst_26 = arith.constant 0.000000e+00 : f32
    %38 = vector.broadcast %cst_26 : f32 to vector<16x128xf32>
    %39 = arith.maximumf %37, %38 : vector<16x128xf32>
    %40 = arith.truncf %39 : vector<16x128xf32> to vector<16x128xbf16>
    %c0_27 = arith.constant 0 : index
    %c0_28 = arith.constant 0 : index
    %41 = vector.load %arg11[%c0_27, %c0_28] : memref<128x256xbf16, #tpu.memory_space<vmem>>, vector<128x256xbf16>
    %cst_29 = arith.constant dense<0.000000e+00> : vector<16x256xf32>
    %42 = tpu.matmul %40, %41, %cst_29 {dimension_numbers = #tpu.dot_dimension_numbers<[1], [0], [0], [1], [0, 0, 1, 1], [], []>} : vector<16x128xbf16>, vector<128x256xbf16>, vector<16x256xf32> -> vector<16x256xf32>
    %c0_30 = arith.constant 0 : index
    %c0_31 = arith.constant 0 : index
    %43 = vector.load %arg12[%c0_30, %c0_31] : memref<1x256xf32, #tpu.memory_space<vmem>>, vector<1x256xf32>
    %44 = vector.broadcast %43 : vector<1x256xf32> to vector<16x256xf32>
    %45 = arith.addf %42, %44 : vector<16x256xf32>
    %cst_32 = arith.constant 0.000000e+00 : f32
    %46 = vector.broadcast %cst_32 : f32 to vector<16x256xf32>
    %47 = arith.maximumf %45, %46 : vector<16x256xf32>
    %48 = arith.truncf %47 : vector<16x256xf32> to vector<16x256xbf16>
    %c0_33 = arith.constant 0 : index
    %c0_34 = arith.constant 0 : index
    %49 = vector.load %arg13[%c0_33, %c0_34] : memref<256x128xbf16, #tpu.memory_space<vmem>>, vector<256x128xbf16>
    %cst_35 = arith.constant dense<0.000000e+00> : vector<16x128xf32>
    %50 = tpu.matmul %48, %49, %cst_35 {dimension_numbers = #tpu.dot_dimension_numbers<[1], [0], [0], [1], [0, 0, 1, 1], [], []>} : vector<16x256xbf16>, vector<256x128xbf16>, vector<16x128xf32> -> vector<16x128xf32>
    %c0_36 = arith.constant 0 : index
    %c0_37 = arith.constant 0 : index
    %51 = vector.load %arg14[%c0_36, %c0_37] : memref<1x128xf32, #tpu.memory_space<vmem>>, vector<1x128xf32>
    %52 = vector.broadcast %51 : vector<1x128xf32> to vector<16x128xf32>
    %53 = arith.addf %50, %52 : vector<16x128xf32>
    %54 = arith.truncf %53 : vector<16x128xf32> to vector<16x128xbf16>
    %c0_38 = arith.constant 0 : index
    %c0_39 = arith.constant 0 : index
    %55 = vector.load %arg15[%c0_38, %c0_39] : memref<16x128xbf16, #tpu.memory_space<vmem>>, vector<16x128xbf16>
    tpu.vector_store %arg15[%c0_38, %c0_39], %54 {strides = array<i32>} : memref<16x128xbf16, #tpu.memory_space<vmem>>, vector<16x128xbf16>,
    return
  }
  func.func @transform_0(%arg0: i32) -> (i32, i32, i32) {
    %c0_i32 = arith.constant 0 : i32
    %c0_i32_0 = arith.constant 0 : i32
    %c0_i32_1 = arith.constant 0 : i32
    return %c0_i32, %arg0, %c0_i32_0 : i32, i32, i32
  }
  func.func @transform_1(%arg0: i32) -> (i32, i32) {
    %c0_i32 = arith.constant 0 : i32
    %c0_i32_0 = arith.constant 0 : i32
    return %arg0, %c0_i32 : i32, i32
  }
  func.func @transform_2(%arg0: i32) -> (i32, i32) {
    %c0_i32 = arith.constant 0 : i32
    %c0_i32_0 = arith.constant 0 : i32
    %c0_i32_1 = arith.constant 0 : i32
    return %c0_i32, %c0_i32_0 : i32, i32
  }
  func.func @transform_3(%arg0: i32) -> (i32, i32) {
    %c0_i32 = arith.constant 0 : i32
    %c0_i32_0 = arith.constant 0 : i32
    %c0_i32_1 = arith.constant 0 : i32
    return %c0_i32, %c0_i32_0 : i32, i32
  }
  func.func @transform_4(%arg0: i32) -> (i32, i32) {
    %c0_i32 = arith.constant 0 : i32
    %c0_i32_0 = arith.constant 0 : i32
    %c0_i32_1 = arith.constant 0 : i32
    return %c0_i32, %c0_i32_0 : i32, i32
  }
  func.func @transform_5(%arg0: i32) -> (i32, i32) {
    %c0_i32 = arith.constant 0 : i32
    %c0_i32_0 = arith.constant 0 : i32
    %c0_i32_1 = arith.constant 0 : i32
    return %c0_i32, %c0_i32_0 : i32, i32
  }
  func.func @transform_6(%arg0: i32) -> (i32, i32) {
    %c0_i32 = arith.constant 0 : i32
    %c0_i32_0 = arith.constant 0 : i32
    %c0_i32_1 = arith.constant 0 : i32
    return %c0_i32, %c0_i32_0 : i32, i32
  }
  func.func @transform_7(%arg0: i32) -> (i32, i32) {
    %c0_i32 = arith.constant 0 : i32
    %c0_i32_0 = arith.constant 0 : i32
    %c0_i32_1 = arith.constant 0 : i32
    return %c0_i32, %c0_i32_0 : i32, i32
  }
  func.func @transform_8(%arg0: i32) -> (i32, i32) {
    %c0_i32 = arith.constant 0 : i32
    %c0_i32_0 = arith.constant 0 : i32
    %c0_i32_1 = arith.constant 0 : i32
    return %c0_i32, %c0_i32_0 : i32, i32
  }
  func.func @transform_9(%arg0: i32) -> (i32, i32) {
    %c0_i32 = arith.constant 0 : i32
    %c0_i32_0 = arith.constant 0 : i32
    %c0_i32_1 = arith.constant 0 : i32
    return %c0_i32, %c0_i32_0 : i32, i32
  }
  func.func @transform_10(%arg0: i32) -> (i32, i32) {
    %c0_i32 = arith.constant 0 : i32
    %c0_i32_0 = arith.constant 0 : i32
    %c0_i32_1 = arith.constant 0 : i32
    return %c0_i32, %c0_i32_0 : i32, i32
  }
  func.func @transform_11(%arg0: i32) -> (i32, i32) {
    %c0_i32 = arith.constant 0 : i32
    %c0_i32_0 = arith.constant 0 : i32
    %c0_i32_1 = arith.constant 0 : i32
    return %c0_i32, %c0_i32_0 : i32, i32
  }
  func.func @transform_12(%arg0: i32) -> (i32, i32) {
    %c0_i32 = arith.constant 0 : i32
    %c0_i32_0 = arith.constant 0 : i32
    %c0_i32_1 = arith.constant 0 : i32
    return %c0_i32, %c0_i32_0 : i32, i32
  }
  func.func @transform_13(%arg0: i32) -> (i32, i32) {
    %c0_i32 = arith.constant 0 : i32
    %c0_i32_0 = arith.constant 0 : i32
    %c0_i32_1 = arith.constant 0 : i32
    return %c0_i32, %c0_i32_0 : i32, i32
  }
  func.func @transform_14(%arg0: i32) -> (i32, i32) {
    %c0_i32 = arith.constant 0 : i32
    %c0_i32_0 = arith.constant 0 : i32
    return %arg0, %c0_i32 : i32, i32
  }
}

</mosaic_0001>

<llo_original>
// kernel: tpu_custom_call.1
$region0: #{tpu_custom_call.1}
  #allocation0 [shape = 'u32[]', space=smem, size = 0x4, offset = 0x4, fixed_abs, tag = 'smem constant byte address 0x4 - core index']
  #allocation1 [shape = 'u32[72,128]{1,0:T(1,128)}', space=vmem, size = 0x9000, scoped, tag = 'internal scratch']
  %s0 = inlined_call_operand.vmem [shape: bf16[2,32,16], index: 0, kind: input, shape index: {}]
  %s1 = inlined_call_operand.vmem [shape: bf16[32,24], index: 1, kind: input, shape index: {}]
  %s2 = inlined_call_operand.vmem [shape: bf16[16,64], index: 2, kind: input, shape index: {}]
  %s3 = inlined_call_operand.vmem [shape: bf16[24,64], index: 3, kind: input, shape index: {}]
  %s4 = inlined_call_operand.vmem [shape: f32[1,64], index: 4, kind: input, shape index: {}]
  %s5 = inlined_call_operand.vmem [shape: bf16[64,32], index: 5, kind: input, shape index: {}]
  %s6 = inlined_call_operand.vmem [shape: f32[1,32], index: 6, kind: input, shape index: {}]
  %s7 = inlined_call_operand.vmem [shape: bf16[32,128], index: 7, kind: input, shape index: {}]
  %s8 = inlined_call_operand.vmem [shape: bf16[32,128], index: 8, kind: input, shape index: {}]
  %s9 = inlined_call_operand.vmem [shape: f32[1,128], index: 9, kind: input, shape index: {}]
  %s10 = inlined_call_operand.hbm [shape: bf16[128,256], index: 10, kind: input, shape index: {}]
  %s11 = inlined_call_operand.vmem [shape: f32[1,256], index: 11, kind: input, shape index: {}]
  %s12 = inlined_call_operand.hbm [shape: bf16[256,128], index: 12, kind: input, shape index: {}]
  %s13 = inlined_call_operand.vmem [shape: f32[1,128], index: 13, kind: input, shape index: {}]
  %s14 = inlined_call_operand.hbm [shape: bf16[32,128], index: 14, kind: output, shape index: {}]
  %s15 = sld [smem:[#allocation0]]
  $region138: #{tpu_custom_call.1} parent=0
    _
  %s17 = ssub.s32 1, %s15
  %s18 = scalar_select 0, %s17, %s15
  $region1: #{tpu_custom_call.1} parent=0
    #allocation2 [shape = 'u8[16384]{0}', space=vmem, size = 0x4000, scoped, tag = 'input window, operand 0']
    #allocation3 [shape = 'u8[65536]{0}', space=vmem, size = 0x10000, scoped, tag = 'input window, operand 10, single buffered']
    #allocation4 [shape = 's32[2]{0}', space=sflag, size = 0x8, scoped, tag = 'scoped memory for tpu_custom_call.1']
    #allocation5 [shape = 's32[2]{0}', space=sflag, size = 0x8, scoped, tag = 'scoped memory for tpu_custom_call.1']
    #allocation6 [shape = 'u8[65536]{0}', space=vmem, size = 0x10000, scoped, tag = 'input window, operand 12, single buffered']
    #allocation7 [shape = 's32[1]{0}', space=sflag, size = 0x4, scoped, tag = 'scoped memory for tpu_custom_call.1']
    #allocation8 [shape = 'u8[8192]{0}', space=vmem, size = 0x2000, scoped, tag = 'output window, operand 0']
    %19 = vsyncpa [#allocation4], 0
    %20 = vsyncpa [#allocation7], 0
    %21 = vsyncpa [#allocation5], 0
    %s22 = scalar_lea.sflag [#allocation5], 1
    %23 = vsyncpa %s22, 0
    loop: start=0, step=1, limit=4
    $region2: #{tpu_custom_call.1} parent=1 // loop_pre_header
      _
    $region3: #{tpu_custom_call.1} parent=1 // loop_header
      %s25 = sphi 0, %s29
      %p26 = scmp.ge.s32.totalorder %s25, 4
      %s35 = sphi 0, %s37
      %s38 = sphi 0, %s35
      %s39 = sphi 0, %s38
      %s55 = sphi 0, %s39
      %s61 = sphi 0, %s63
      %s64 = sphi 0, %s61
      %s65 = sphi 0, %s64
      %s81 = sphi 0, %s65
      %s85 = sphi 0, %s85
      %s87 = sphi 0, %s85
      %s88 = sphi 0, %s87
      %s102 = sphi 0, %s88
      %s106 = sphi 0, %s106
      %s108 = sphi 0, %s106
      %s109 = sphi 0, %s108
      %s123 = sphi 0, %s109
      %s127 = sphi 0, %s127
      %s129 = sphi 0, %s127
      %s130 = sphi 0, %s129
      %s144 = sphi 0, %s130
      %s148 = sphi 0, %s148
      %s150 = sphi 0, %s148
      %s151 = sphi 0, %s150
      %s165 = sphi 0, %s151
      %s169 = sphi 0, %s169
      %s171 = sphi 0, %s169
      %s172 = sphi 0, %s171
      %s186 = sphi 0, %s172
      %s190 = sphi 0, %s190
      %s192 = sphi 0, %s190
      %s193 = sphi 0, %s192
      %s207 = sphi 0, %s193
      %s211 = sphi 0, %s211
      %s213 = sphi 0, %s211
      %s214 = sphi 0, %s213
      %s228 = sphi 0, %s214
      %s232 = sphi 0, %s232
      %s234 = sphi 0, %s232
      %s235 = sphi 0, %s234
      %s249 = sphi 0, %s235
      %s253 = sphi 0, %s253
      %s255 = sphi 0, %s253
      %s256 = sphi 0, %s255
      %s270 = sphi 0, %s256
      %s274 = sphi 0, %s274
      %s276 = sphi 0, %s274
      %s277 = sphi 0, %s276
      %s291 = sphi 0, %s277
      %s295 = sphi 0, %s295
      %s297 = sphi 0, %s295
      %s298 = sphi 0, %s297
      %s312 = sphi 0, %s298
      %s316 = sphi 0, %s316
      %s318 = sphi 0, %s316
      %s319 = sphi 0, %s318
      %s333 = sphi 0, %s319
      %s339 = sphi 0, %s341
      %s342 = sphi 0, %s339
      %s343 = sphi 0, %s342
      %s359 = sphi 0, %s343
    $region4: #{tpu_custom_call.1} parent=1 // loop_header_branch
      %28 = sbr.rel (%p26) target = $region8
    $region5: #{tpu_custom_call.1} parent=1 // loop_body
      %s30 = ssub.s32 %s25, 1
      %s31 = ssub.s32 %s25, 2
      %s32 = sadd.s32 %s25, 1
      %s33 = ssub.s32 %s25, %s32
      %p34 = scmp.eq.s32.totalorder %s33, 0
      %s36 = sadd.s32 %s35, 1
      %s37 = scalar_select %p34, %s35, %s36
      %p40 = pneg %p34
      %p41 = scmp.eq.s32.totalorder %s25, 1
      %p42 = por %p40, %p41
      %p43 = scmp.ne.s32.totalorder %s35, %s38
      %p44 = scmp.eq.s32.totalorder %s25, 0
      %p45 = por %p43, %p44
      %p46 = scmp.ne.s32.totalorder %s35, %s38
      %p47 = scmp.eq.s32.totalorder %s30, 1
      %p48 = por %p46, %p47
      %p49 = scmp.ne.s32.totalorder %s38, %s39
      %p50 = scmp.eq.s32.totalorder %s30, 0
      %p51 = por %p49, %p50
      %p52 = scmp.ne.s32.totalorder %s38, %s39
      %p53 = scmp.eq.s32.totalorder %s31, 1
      %p54 = por %p52, %p53
      %p56 = scmp.ne.s32.totalorder %s39, %s55
      %p57 = scmp.eq.s32.totalorder %s31, 0
      %p58 = por %p56, %p57
      %s59 = ssub.s32 %s25, %s32
      %p60 = scmp.eq.s32.totalorder %s59, 0
      %s62 = sadd.s32 %s61, 1
      %s63 = scalar_select %p60, %s61, %s62
      %p66 = pneg %p60
      %p67 = scmp.eq.s32.totalorder %s25, 1
      %p68 = por %p66, %p67
      %p69 = scmp.ne.s32.totalorder %s61, %s64
      %p70 = scmp.eq.s32.totalorder %s25, 0
      %p71 = por %p69, %p70
      %p72 = scmp.ne.s32.totalorder %s61, %s64
      %p73 = scmp.eq.s32.totalorder %s30, 1
      %p74 = por %p72, %p73
      %p75 = scmp.ne.s32.totalorder %s64, %s65
      %p76 = scmp.eq.s32.totalorder %s30, 0
      %p77 = por %p75, %p76
      %p78 = scmp.ne.s32.totalorder %s64, %s65
      %p79 = scmp.eq.s32.totalorder %s31, 1
      %p80 = por %p78, %p79
      %p82 = scmp.ne.s32.totalorder %s65, %s81
      %p83 = scmp.eq.s32.totalorder %s31, 0
      %p84 = por %p82, %p83
      %s86 = sadd.s32 %s85, 1
      %p89 = scmp.eq.s32.totalorder %s25, 1
      %p90 = scmp.ne.s32.totalorder %s85, %s87
      %p91 = scmp.eq.s32.totalorder %s25, 0
      %p92 = por %p90, %p91
      %p93 = scmp.ne.s32.totalorder %s85, %s87
      %p94 = scmp.eq.s32.totalorder %s30, 1
      %p95 = por %p93, %p94
      %p96 = scmp.ne.s32.totalorder %s87, %s88
      %p97 = scmp.eq.s32.totalorder %s30, 0
      %p98 = por %p96, %p97
      %p99 = scmp.ne.s32.totalorder %s87, %s88
      %p100 = scmp.eq.s32.totalorder %s31, 1
      %p101 = por %p99, %p100
      %p103 = scmp.ne.s32.totalorder %s88, %s102
      %p104 = scmp.eq.s32.totalorder %s31, 0
      %p105 = por %p103, %p104
      %s107 = sadd.s32 %s106, 1
      %p110 = scmp.eq.s32.totalorder %s25, 1
      %p111 = scmp.ne.s32.totalorder %s106, %s108
      %p112 = scmp.eq.s32.totalorder %s25, 0
      %p113 = por %p111, %p112
      %p114 = scmp.ne.s32.totalorder %s106, %s108
      %p115 = scmp.eq.s32.totalorder %s30, 1
      %p116 = por %p114, %p115
      %p117 = scmp.ne.s32.totalorder %s108, %s109
      %p118 = scmp.eq.s32.totalorder %s30, 0
      %p119 = por %p117, %p118
      %p120 = scmp.ne.s32.totalorder %s108, %s109
      %p121 = scmp.eq.s32.totalorder %s31, 1
      %p122 = por %p120, %p121
      %p124 = scmp.ne.s32.totalorder %s109, %s123
      %p125 = scmp.eq.s32.totalorder %s31, 0
      %p126 = por %p124, %p125
      %s128 = sadd.s32 %s127, 1
      %p131 = scmp.eq.s32.totalorder %s25, 1
      %p132 = scmp.ne.s32.totalorder %s127, %s129
      %p133 = scmp.eq.s32.totalorder %s25, 0
      %p134 = por %p132, %p133
      %p135 = scmp.ne.s32.totalorder %s127, %s129
      %p136 = scmp.eq.s32.totalorder %s30, 1
      %p137 = por %p135, %p136
      %p138 = scmp.ne.s32.totalorder %s129, %s130
      %p139 = scmp.eq.s32.totalorder %s30, 0
      %p140 = por %p138, %p139
      %p141 = scmp.ne.s32.totalorder %s129, %s130
      %p142 = scmp.eq.s32.totalorder %s31, 1
      %p143 = por %p141, %p142
      %p145 = scmp.ne.s32.totalorder %s130, %s144
      %p146 = scmp.eq.s32.totalorder %s31, 0
      %p147 = por %p145, %p146
      %s149 = sadd.s32 %s148, 1
      %p152 = scmp.eq.s32.totalorder %s25, 1
      %p153 = scmp.ne.s32.totalorder %s148, %s150
      %p154 = scmp.eq.s32.totalorder %s25, 0
      %p155 = por %p153, %p154
      %p156 = scmp.ne.s32.totalorder %s148, %s150
      %p157 = scmp.eq.s32.totalorder %s30, 1
      %p158 = por %p156, %p157
      %p159 = scmp.ne.s32.totalorder %s150, %s151
      %p160 = scmp.eq.s32.totalorder %s30, 0
      %p161 = por %p159, %p160
      %p162 = scmp.ne.s32.totalorder %s150, %s151
      %p163 = scmp.eq.s32.totalorder %s31, 1
      %p164 = por %p162, %p163
      %p166 = scmp.ne.s32.totalorder %s151, %s165
      %p167 = scmp.eq.s32.totalorder %s31, 0
      %p168 = por %p166, %p167
      %s170 = sadd.s32 %s169, 1
      %p173 = scmp.eq.s32.totalorder %s25, 1
      %p174 = scmp.ne.s32.totalorder %s169, %s171
      %p175 = scmp.eq.s32.totalorder %s25, 0
      %p176 = por %p174, %p175
      %p177 = scmp.ne.s32.totalorder %s169, %s171
      %p178 = scmp.eq.s32.totalorder %s30, 1
      %p179 = por %p177, %p178
      %p180 = scmp.ne.s32.totalorder %s171, %s172
      %p181 = scmp.eq.s32.totalorder %s30, 0
      %p182 = por %p180, %p181
      %p183 = scmp.ne.s32.totalorder %s171, %s172
      %p184 = scmp.eq.s32.totalorder %s31, 1
      %p185 = por %p183, %p184
      %p187 = scmp.ne.s32.totalorder %s172, %s186
      %p188 = scmp.eq.s32.totalorder %s31, 0
      %p189 = por %p187, %p188
      %s191 = sadd.s32 %s190, 1
      %p194 = scmp.eq.s32.totalorder %s25, 1
      %p195 = scmp.ne.s32.totalorder %s190, %s192
      %p196 = scmp.eq.s32.totalorder %s25, 0
      %p197 = por %p195, %p196
      %p198 = scmp.ne.s32.totalorder %s190, %s192
      %p199 = scmp.eq.s32.totalorder %s30, 1
      %p200 = por %p198, %p199
      %p201 = scmp.ne.s32.totalorder %s192, %s193
      %p202 = scmp.eq.s32.totalorder %s30, 0
      %p203 = por %p201, %p202
      %p204 = scmp.ne.s32.totalorder %s192, %s193
      %p205 = scmp.eq.s32.totalorder %s31, 1
      %p206 = por %p204, %p205
      %p208 = scmp.ne.s32.totalorder %s193, %s207
      %p209 = scmp.eq.s32.totalorder %s31, 0
      %p210 = por %p208, %p209
      %s212 = sadd.s32 %s211, 1
      %p215 = scmp.eq.s32.totalorder %s25, 1
      %p216 = scmp.ne.s32.totalorder %s211, %s213
      %p217 = scmp.eq.s32.totalorder %s25, 0
      %p218 = por %p216, %p217
      %p219 = scmp.ne.s32.totalorder %s211, %s213
      %p220 = scmp.eq.s32.totalorder %s30, 1
      %p221 = por %p219, %p220
      %p222 = scmp.ne.s32.totalorder %s213, %s214
      %p223 = scmp.eq.s32.totalorder %s30, 0
      %p224 = por %p222, %p223
      %p225 = scmp.ne.s32.totalorder %s213, %s214
      %p226 = scmp.eq.s32.totalorder %s31, 1
      %p227 = por %p225, %p226
      %p229 = scmp.ne.s32.totalorder %s214, %s228
      %p230 = scmp.eq.s32.totalorder %s31, 0
      %p231 = por %p229, %p230
      %s233 = sadd.s32 %s232, 1
      %p236 = scmp.eq.s32.totalorder %s25, 1
      %p237 = scmp.ne.s32.totalorder %s232, %s234
      %p238 = scmp.eq.s32.totalorder %s25, 0
      %p239 = por %p237, %p238
      %p240 = scmp.ne.s32.totalorder %s232, %s234
      %p241 = scmp.eq.s32.totalorder %s30, 1
      %p242 = por %p240, %p241
      %p243 = scmp.ne.s32.totalorder %s234, %s235
      %p244 = scmp.eq.s32.totalorder %s30, 0
      %p245 = por %p243, %p244
      %p246 = scmp.ne.s32.totalorder %s234, %s235
      %p247 = scmp.eq.s32.totalorder %s31, 1
      %p248 = por %p246, %p247
      %p250 = scmp.ne.s32.totalorder %s235, %s249
      %p251 = scmp.eq.s32.totalorder %s31, 0
      %p252 = por %p250, %p251
      %s254 = sadd.s32 %s253, 1
      %p257 = scmp.eq.s32.totalorder %s25, 1
      %p258 = scmp.ne.s32.totalorder %s253, %s255
      %p259 = scmp.eq.s32.totalorder %s25, 0
      %p260 = por %p258, %p259
      %p261 = scmp.ne.s32.totalorder %s253, %s255
      %p262 = scmp.eq.s32.totalorder %s30, 1
      %p263 = por %p261, %p262
      %p264 = scmp.ne.s32.totalorder %s255, %s256
      %p265 = scmp.eq.s32.totalorder %s30, 0
      %p266 = por %p264, %p265
      %p267 = scmp.ne.s32.totalorder %s255, %s256
      %p268 = scmp.eq.s32.totalorder %s31, 1
      %p269 = por %p267, %p268
      %p271 = scmp.ne.s32.totalorder %s256, %s270
      %p272 = scmp.eq.s32.totalorder %s31, 0
      %p273 = por %p271, %p272
      %s275 = sadd.s32 %s274, 1
      %p278 = scmp.eq.s32.totalorder %s25, 1
      %p279 = scmp.ne.s32.totalorder %s274, %s276
      %p280 = scmp.eq.s32.totalorder %s25, 0
      %p281 = por %p279, %p280
      %p282 = scmp.ne.s32.totalorder %s274, %s276
      %p283 = scmp.eq.s32.totalorder %s30, 1
      %p284 = por %p282, %p283
      %p285 = scmp.ne.s32.totalorder %s276, %s277
      %p286 = scmp.eq.s32.totalorder %s30, 0
      %p287 = por %p285, %p286
      %p288 = scmp.ne.s32.totalorder %s276, %s277
      %p289 = scmp.eq.s32.totalorder %s31, 1
      %p290 = por %p288, %p289
      %p292 = scmp.ne.s32.totalorder %s277, %s291
      %p293 = scmp.eq.s32.totalorder %s31, 0
      %p294 = por %p292, %p293
      %s296 = sadd.s32 %s295, 1
      %p299 = scmp.eq.s32.totalorder %s25, 1
      %p300 = scmp.ne.s32.totalorder %s295, %s297
      %p301 = scmp.eq.s32.totalorder %s25, 0
      %p302 = por %p300, %p301
      %p303 = scmp.ne.s32.totalorder %s295, %s297
      %p304 = scmp.eq.s32.totalorder %s30, 1
      %p305 = por %p303, %p304
      %p306 = scmp.ne.s32.totalorder %s297, %s298
      %p307 = scmp.eq.s32.totalorder %s30, 0
      %p308 = por %p306, %p307
      %p309 = scmp.ne.s32.totalorder %s297, %s298
      %p310 = scmp.eq.s32.totalorder %s31, 1
      %p311 = por %p309, %p310
      %p313 = scmp.ne.s32.totalorder %s298, %s312
      %p314 = scmp.eq.s32.totalorder %s31, 0
      %p315 = por %p313, %p314
      %s317 = sadd.s32 %s316, 1
      %p320 = scmp.eq.s32.totalorder %s25, 1
      %p321 = scmp.ne.s32.totalorder %s316, %s318
      %p322 = scmp.eq.s32.totalorder %s25, 0
      %p323 = por %p321, %p322
      %p324 = scmp.ne.s32.totalorder %s316, %s318
      %p325 = scmp.eq.s32.totalorder %s30, 1
      %p326 = por %p324, %p325
      %p327 = scmp.ne.s32.totalorder %s318, %s319
      %p328 = scmp.eq.s32.totalorder %s30, 0
      %p329 = por %p327, %p328
      %p330 = scmp.ne.s32.totalorder %s318, %s319
      %p331 = scmp.eq.s32.totalorder %s31, 1
      %p332 = por %p330, %p331
      %p334 = scmp.ne.s32.totalorder %s319, %s333
      %p335 = scmp.eq.s32.totalorder %s31, 0
      %p336 = por %p334, %p335
      %s337 = ssub.s32 %s25, %s32
      %p338 = scmp.eq.s32.totalorder %s337, 0
      %s340 = sadd.s32 %s339, 1
      %s341 = scalar_select %p338, %s339, %s340
      %p344 = pneg %p338
      %p345 = scmp.eq.s32.totalorder %s25, 1
      %p346 = por %p344, %p345
      %p347 = scmp.ne.s32.totalorder %s339, %s342
      %p348 = scmp.eq.s32.totalorder %s25, 0
      %p349 = por %p347, %p348
      %p350 = scmp.ne.s32.totalorder %s339, %s342
      %p351 = scmp.eq.s32.totalorder %s30, 1
      %p352 = por %p350, %p351
      %p353 = scmp.ne.s32.totalorder %s342, %s343
      %p354 = scmp.eq.s32.totalorder %s30, 0
      %p355 = por %p353, %p354
      %p356 = scmp.ne.s32.totalorder %s342, %s343
      %p357 = scmp.eq.s32.totalorder %s31, 1
      %p358 = por %p356, %p357
      %p360 = scmp.ne.s32.totalorder %s343, %s359
      %p361 = scmp.eq.s32.totalorder %s31, 0
      %p362 = por %p360, %p361
      %p363 = scmp.le.s32.totalorder 1, %s25
      %p364 = scmp.lt.s32.totalorder %s25, 3
      %p365 = pnand %p363, %p364
      %p366 = pneg %p365
      // Predicated region
      $region9: #{tpu_custom_call.1} parent=5 // pred_check
        _
      $region10: #{tpu_custom_call.1} parent=5 // pred_check_branch
        %368 = sbr.rel (%p365) target = $region12
      $region11: #{tpu_custom_call.1} parent=5 // pred_region
        %s369 = ssub.s32 %s25, 1
        // Predicated region
        $region13: #{tpu_custom_call.1} parent=11 // pred_check
          %p370 = pneg %p98
        $region14: #{tpu_custom_call.1} parent=11 // pred_check_branch
          %372 = sbr.rel (%p370) target = $region16
        $region15: #{tpu_custom_call.1} parent=11 // pred_region
          _
        $region16: #{tpu_custom_call.1} parent=11 // pred_fallthru
          _
        // Predicated region
        $region17: #{tpu_custom_call.1} parent=11 // pred_check
          %p373 = pneg %p119
        $region18: #{tpu_custom_call.1} parent=11 // pred_check_branch
          %375 = sbr.rel (%p373) target = $region20
        $region19: #{tpu_custom_call.1} parent=11 // pred_region
          _
        $region20: #{tpu_custom_call.1} parent=11 // pred_fallthru
          _
        // Predicated region
        $region21: #{tpu_custom_call.1} parent=11 // pred_check
          %p376 = pneg %p140
        $region22: #{tpu_custom_call.1} parent=11 // pred_check_branch
          %378 = sbr.rel (%p376) target = $region24
        $region23: #{tpu_custom_call.1} parent=11 // pred_region
          _
        $region24: #{tpu_custom_call.1} parent=11 // pred_fallthru
          _
        // Predicated region
        $region25: #{tpu_custom_call.1} parent=11 // pred_check
          %p379 = pneg %p161
        $region26: #{tpu_custom_call.1} parent=11 // pred_check_branch
          %381 = sbr.rel (%p379) target = $region28
        $region27: #{tpu_custom_call.1} parent=11 // pred_region
          _
        $region28: #{tpu_custom_call.1} parent=11 // pred_fallthru
          _
        // Predicated region
        $region29: #{tpu_custom_call.1} parent=11 // pred_check
          %p382 = pneg %p182
        $region30: #{tpu_custom_call.1} parent=11 // pred_check_branch
          %384 = sbr.rel (%p382) target = $region32
        $region31: #{tpu_custom_call.1} parent=11 // pred_region
          _
        $region32: #{tpu_custom_call.1} parent=11 // pred_fallthru
          _
        // Predicated region
        $region33: #{tpu_custom_call.1} parent=11 // pred_check
          %p385 = pneg %p203
        $region34: #{tpu_custom_call.1} parent=11 // pred_check_branch
          %387 = sbr.rel (%p385) target = $region36
        $region35: #{tpu_custom_call.1} parent=11 // pred_region
          _
        $region36: #{tpu_custom_call.1} parent=11 // pred_fallthru
          _
        // Predicated region
        $region37: #{tpu_custom_call.1} parent=11 // pred_check
          %p388 = pneg %p224
        $region38: #{tpu_custom_call.1} parent=11 // pred_check_branch
          %390 = sbr.rel (%p388) target = $region40
        $region39: #{tpu_custom_call.1} parent=11 // pred_region
          _
        $region40: #{tpu_custom_call.1} parent=11 // pred_fallthru
          _
        // Predicated region
        $region41: #{tpu_custom_call.1} parent=11 // pred_check
          %p391 = pneg %p245
        $region42: #{tpu_custom_call.1} parent=11 // pred_check_branch
          %393 = sbr.rel (%p391) target = $region44
        $region43: #{tpu_custom_call.1} parent=11 // pred_region
          _
        $region44: #{tpu_custom_call.1} parent=11 // pred_fallthru
          _
        // Predicated region
        $region45: #{tpu_custom_call.1} parent=11 // pred_check
          %p394 = pneg %p266
        $region46: #{tpu_custom_call.1} parent=11 // pred_check_branch
          %396 = sbr.rel (%p394) target = $region48
        $region47: #{tpu_custom_call.1} parent=11 // pred_region
          %398 = vsyncadd [#allocation4], 0
          %s399 = sshll.u32 %s10, 4
          %s400 = int_to_ptr.hbm [resolvable:$true] %s399
          %s401 = sshll.u32 [#allocation3], 4
          %s402 = int_to_ptr.vmem [resolvable:$true] %s401
          %407 = dma.hbm_to_vmem [thread:$0]  %s400, 2048, %s402, [#allocation4], 128, 128, 8
        $region48: #{tpu_custom_call.1} parent=11 // pred_fallthru
          _
        // Predicated region
        $region49: #{tpu_custom_call.1} parent=11 // pred_check
          %p408 = pneg %p287
        $region50: #{tpu_custom_call.1} parent=11 // pred_check_branch
          %410 = sbr.rel (%p408) target = $region52
        $region51: #{tpu_custom_call.1} parent=11 // pred_region
          _
        $region52: #{tpu_custom_call.1} parent=11 // pred_fallthru
          _
        // Predicated region
        $region53: #{tpu_custom_call.1} parent=11 // pred_check
          %p411 = pneg %p308
        $region54: #{tpu_custom_call.1} parent=11 // pred_check_branch
          %413 = sbr.rel (%p411) target = $region56
        $region55: #{tpu_custom_call.1} parent=11 // pred_region
          %415 = vsyncadd [#allocation7], 0
          %s416 = sshll.u32 %s12, 4
          %s417 = int_to_ptr.hbm [resolvable:$true] %s416
          %s418 = sshll.u32 [#allocation6], 4
          %s419 = int_to_ptr.vmem [resolvable:$true] %s418
          %424 = dma.hbm_to_vmem [thread:$0]  %s417, 2048, %s419, [#allocation7], 64, 64, 4
        $region56: #{tpu_custom_call.1} parent=11 // pred_fallthru
          _
        // Predicated region
        $region57: #{tpu_custom_call.1} parent=11 // pred_check
          %p425 = pneg %p329
        $region58: #{tpu_custom_call.1} parent=11 // pred_check_branch
          %427 = sbr.rel (%p425) target = $region60
        $region59: #{tpu_custom_call.1} parent=11 // pred_region
          _
        $region60: #{tpu_custom_call.1} parent=11 // pred_fallthru
          _
      $region12: #{tpu_custom_call.1} parent=5 // pred_fallthru
        _
      %p428 = scmp.lt.s32.totalorder %s25, 2
      // Predicated region
      $region61: #{tpu_custom_call.1} parent=5 // pred_check
        %p429 = pneg %p428
      $region62: #{tpu_custom_call.1} parent=5 // pred_check_branch
        %431 = sbr.rel (%p429) target = $region64
      $region63: #{tpu_custom_call.1} parent=5 // pred_region
        // Predicated region
        $region65: #{tpu_custom_call.1} parent=63 // pred_check
          %p432 = pneg %p45
        $region66: #{tpu_custom_call.1} parent=63 // pred_check_branch
          %434 = sbr.rel (%p432) target = $region68
        $region67: #{tpu_custom_call.1} parent=63 // pred_region
          %s435 = sand.u32 %s35, 1
          %s436 = sand.u32 %s35, 1
          %s437 = smul.addr %s436, 16
          %s438 = scalar_lea.vmem [#allocation2], %s437
          %s439 = smul.u32 2, %s25
          %s440 = smul.addr %s439, 4
          %s441 = scalar_lea.vmem %s0, %s440
          // Predicated region
          $region69: #{tpu_custom_call.1} parent=67 // pred_check
            _
          $region70: #{tpu_custom_call.1} parent=67 // pred_check_branch
            %443 = sbr.rel (0) target = $region72
          $region71: #{tpu_custom_call.1} parent=67 // pred_region
            // Predicated region
            $region73: #{tpu_custom_call.1} parent=71 // pred_check
              _
            $region74: #{tpu_custom_call.1} parent=71 // pred_check_branch
              %445 = sbr.rel target = $region76
            $region75: #{tpu_custom_call.1} parent=71 // pred_region
              // Predicated region
              $region88: #{tpu_custom_call.1} parent=75 // pred_check
                _
              $region89: #{tpu_custom_call.1} parent=75 // pred_check_branch
                %467 = sbr.rel (0) target = $region91
              $region90: #{tpu_custom_call.1} parent=75 // pred_region
                loop: start=0, step=1, limit=1
                $region92: #{tpu_custom_call.1} parent=90 // loop_pre_header
                  _
                $region93: #{tpu_custom_call.1} parent=90 // loop_header
                  %s469 = sphi 0, %s473
                  %p470 = scmp.ge.s32.totalorder %s469, 1
                  %s474 = sphi %s441, %s441
                  %s475 = sphi %s438, %s438
                $region94: #{tpu_custom_call.1} parent=90 // loop_header_branch
                  %472 = sbr.rel (%p470) target = $region98
                $region95: #{tpu_custom_call.1} parent=90 // loop_body
                  _
                $region96: #{tpu_custom_call.1} parent=90 // loop_footer
                  %s473 = sadd.s32 1, %s469
                $region97: #{tpu_custom_call.1} parent=90 // loop_footer_branch
                  %468 = sbr.rel target = $region93
                $region98: #{tpu_custom_call.1} parent=90 // loop_exit
                  _
                %s477 = ssub.s32 16, 1
                loop: start=0, step=1, limit=1
                $region99: #{tpu_custom_call.1} parent=90 // loop_pre_header
                  _
                $region100: #{tpu_custom_call.1} parent=90 // loop_header
                  %s479 = sphi 0, %s483
                  %p480 = scmp.ge.s32.totalorder %s479, 1
                  %s484 = sphi %s441, %s441
                  %s485 = sphi %s438, %s438
                $region101: #{tpu_custom_call.1} parent=90 // loop_header_branch
                  %482 = sbr.rel (%p480) target = $region105
                $region102: #{tpu_custom_call.1} parent=90 // loop_body
                  %v486 = vld [vmem:[%s484] sm:%s477]
                  %487 = vst [vmem:[%s485] sm:%s477] %v486
                  %v488 = vld [vmem:[%s484 + $0x4] sm:%s477]
                  %489 = vst [vmem:[%s485 + $0x4] sm:%s477] %v488
                  %v490 = vld [vmem:[%s484 + $0x10] sm:%s477]
                  %491 = vst [vmem:[%s485 + $0x8] sm:%s477] %v490
                  %v492 = vld [vmem:[%s484 + $0x14] sm:%s477]
                  %493 = vst [vmem:[%s485 + $0xc] sm:%s477] %v492
                $region103: #{tpu_custom_call.1} parent=90 // loop_footer
                  %s483 = sadd.s32 1, %s479
                $region104: #{tpu_custom_call.1} parent=90 // loop_footer_branch
                  %478 = sbr.rel target = $region100
                $region105: #{tpu_custom_call.1} parent=90 // loop_exit
                  _
              $region91: #{tpu_custom_call.1} parent=75 // pred_fallthru
                _
            $region76: #{tpu_custom_call.1} parent=71 // pred_fallthru
              _
            // Predicated region
            $region77: #{tpu_custom_call.1} parent=71 // pred_check
              _
            $region78: #{tpu_custom_call.1} parent=71 // pred_check_branch
              %447 = sbr.rel (0) target = $region80
            $region79: #{tpu_custom_call.1} parent=71 // pred_region
              %s449 = ssub.s32 16, 1
              loop: start=0, step=1, limit=1
              $region81: #{tpu_custom_call.1} parent=79 // loop_pre_header
                _
              $region82: #{tpu_custom_call.1} parent=79 // loop_header
                %s451 = sphi 0, %s455
                %p452 = scmp.ge.s32.totalorder %s451, 1
                %s456 = sphi %s441, %s441
                %s457 = sphi %s438, %s438
              $region83: #{tpu_custom_call.1} parent=79 // loop_header_branch
                %454 = sbr.rel (%p452) target = $region87
              $region84: #{tpu_custom_call.1} parent=79 // loop_body
                %v458 = vld [vmem:[%s456] sm:%s449]
                %459 = vst [vmem:[%s457] sm:%s449] %v458
                %v460 = vld [vmem:[%s456 + $0x4] sm:%s449]
                %461 = vst [vmem:[%s457 + $0x4] sm:%s449] %v460
                %v462 = vld [vmem:[%s456 + $0x10] sm:%s449]
                %463 = vst [vmem:[%s457 + $0x8] sm:%s449] %v462
                %v464 = vld [vmem:[%s456 + $0x14] sm:%s449]
                %465 = vst [vmem:[%s457 + $0xc] sm:%s449] %v464
              $region85: #{tpu_custom_call.1} parent=79 // loop_footer
                %s455 = sadd.s32 1, %s451
              $region86: #{tpu_custom_call.1} parent=79 // loop_footer_branch
                %450 = sbr.rel target = $region82
              $region87: #{tpu_custom_call.1} parent=79 // loop_exit
                _
            $region80: #{tpu_custom_call.1} parent=71 // pred_fallthru
              _
          $region72: #{tpu_custom_call.1} parent=67 // pred_fallthru
            _
          %494 = vnop
        $region68: #{tpu_custom_call.1} parent=63 // pred_fallthru
          _
        // Predicated region
        $region106: #{tpu_custom_call.1} parent=63 // pred_check
          %p495 = pneg %p71
        $region107: #{tpu_custom_call.1} parent=63 // pred_check_branch
          %497 = sbr.rel (%p495) target = $region109
        $region108: #{tpu_custom_call.1} parent=63 // pred_region
          %s498 = smul.u32 2, %s25
          %p499 = scmp.lt.s32.totalorder %s498, 3
          %s500 = scalar_select %p499, %s498, 3
          %s501 = smul.addr %s500, 4
          %s502 = scalar_lea.vmem %s1, %s501
          %s503 = smul.u32 2, %s25
        $region109: #{tpu_custom_call.1} parent=63 // pred_fallthru
          _
      $region64: #{tpu_custom_call.1} parent=5 // pred_fallthru
        _
      %p504 = scmp.le.s32.totalorder 1, %s25
      %p505 = scmp.lt.s32.totalorder %s25, 3
      %p506 = pnand %p504, %p505
      %p507 = pneg %p506
      // Predicated region
      $region110: #{tpu_custom_call.1} parent=5 // pred_check
        _
      $region111: #{tpu_custom_call.1} parent=5 // pred_check_branch
        %509 = sbr.rel (%p506) target = $region113
      $region112: #{tpu_custom_call.1} parent=5 // pred_region
        %s510 = ssub.s32 %s25, 1
        %s511 = sand.u32 %s38, 1
        %s512 = sand.u32 %s38, 1
        %s513 = smul.addr %s512, 16
        %s514 = scalar_lea.vmem [#allocation2], %s513
        // Predicated region
        $region114: #{tpu_custom_call.1} parent=112 // pred_check
          %p515 = pneg %p51
        $region115: #{tpu_custom_call.1} parent=112 // pred_check_branch
          %517 = sbr.rel (%p515) target = $region117
        $region116: #{tpu_custom_call.1} parent=112 // pred_region
          _
        $region117: #{tpu_custom_call.1} parent=112 // pred_fallthru
          _
        // Predicated region
        $region118: #{tpu_custom_call.1} parent=112 // pred_check
          %p518 = pneg %p266
        $region119: #{tpu_custom_call.1} parent=112 // pred_check_branch
          %520 = sbr.rel (%p518) target = $region121
        $region120: #{tpu_custom_call.1} parent=112 // pred_region
          %522 = dma.done [#allocation4], 2048
        $region121: #{tpu_custom_call.1} parent=112 // pred_fallthru
          _
        // Predicated region
        $region122: #{tpu_custom_call.1} parent=112 // pred_check
          %p523 = pneg %p308
        $region123: #{tpu_custom_call.1} parent=112 // pred_check_branch
          %525 = sbr.rel (%p523) target = $region125
        $region124: #{tpu_custom_call.1} parent=112 // pred_region
          %527 = dma.done [#allocation7], 2048
        $region125: #{tpu_custom_call.1} parent=112 // pred_fallthru
          _
        %s528 = sand.u32 %s38, 1
        %s529 = sand.u32 %s38, 1
        %s530 = smul.addr %s529, 16
        %s531 = scalar_lea.vmem [#allocation2], %s530
        %p532 = pneg %p51
        %p533 = pneg %p48
        %s534 = smul.u32 2, %s30
        %p535 = scmp.lt.s32.totalorder %s534, 3
        %s536 = scalar_select %p535, %s534, 3
        %s537 = smul.addr %s536, 4
        %s538 = scalar_lea.vmem %s1, %s537
        %p539 = pneg %p77
        %p540 = pneg %p74
        %p541 = pneg %p98
        %p542 = pneg %p95
        %p543 = pneg %p119
        %p544 = pneg %p116
        %p545 = pneg %p140
        %p546 = pneg %p137
        %p547 = pneg %p161
        %p548 = pneg %p158
        %p549 = pneg %p182
        %p550 = pneg %p179
        %p551 = pneg %p203
        %p552 = pneg %p200
        %p553 = pneg %p224
        %p554 = pneg %p221
        %p555 = pneg %p245
        %p556 = pneg %p242
        %p557 = pneg %p266
        %p558 = pneg %p263
        %p559 = pneg %p287
        %p560 = pneg %p284
        %p561 = pneg %p308
        %p562 = pneg %p305
        %p563 = pneg %p329
        %p564 = pneg %p326
        %p565 = pneg %p355
        %p566 = pneg %p352
        %s567 = sand.u32 %s342, 1
        %s568 = scalar_lea.sflag [#allocation5], %s567
        %s569 = sand.u32 %s342, 1
        %s570 = smul.addr %s569, 8
        %s571 = scalar_lea.vmem [#allocation8], %s570
        %s572 = smul.u32 2, %s30
        %s573 = smul.u32 2, %s30
        %p574 = scmp.lt.s32.totalorder %s573, 3
        %s575 = scalar_select %p574, %s573, 3
        %s576 = smul.addr %s575, 4
        %s577 = scalar_lea.vmem %s1, %s576
        %s578 = smul.u32 2, %s30
        %s579 = smul.u32 2, %s30
        %v581 = vld [vmem:[%s577] sm:$0xf]
        %v582 = vld [vmem:[%s577 + $0x4] sm:$0xf]
        %v583 = vld [vmem:[%s3] sm:$0xf]
        %v584 = vld [vmem:[%s3 + $0x4] sm:$0xf]
        %v585 = vld [vmem:[%s3 + $0x8] sm:$0xf]
        %v588 = vunpack.c.l.b16 %v581
        %v589 = vunpack.c.l.b16 %v582
        %v590 = vpack.c.b16 %v589, %v588
        %v594 = vunpack.c.l.b16 %v583
        %v595 = vunpack.c.l.b16 %v584
        %v596 = vunpack.c.l.b16 %v585
        %v597 = vpack.c.b16 %v595, %v594
        %v598 = vpack.c.b16 %v596, %v596
        %vm600 = vcmask 195584
        %v602 = vsel %vm600, %v590, 0
        %vm604 = vcmask 1043456
        %v606 = vsel %vm604, %v598, 0
        %608 = vmatpush.bf16.msra.mxu0 0
        %609 = vmatpush.bf16.msra.mxu0 0
        %610 = vmatpush.bf16.msra.mxu0 0
        %611 = vmatpush.bf16.msra.mxu0 0
        %612 = vmatpush.bf16.msra.mxu0 0
        %613 = vmatpush.bf16.msra.mxu0 0
        %614 = vmatpush.bf16.msra.mxu0 %v606
        %615 = vmatpush.bf16.msra.mxu0 %v597
        %616 = vmatmul.bf16.gmra.mxu0 %v602
        %v617 = vpop.f32.mrf.mxu0
        %v618 = vadd.f32 0.0, %v617
        %v619 = vpop.f32.mrf.mxu0
        %v620 = vadd.f32 0.0, %v619
        %621 = vdwg.mxu0
        %v622 = vld [vmem:[%s514] sm:$0xf]
        %v623 = vld [vmem:[%s514 + $0x4] sm:$0xf]
        %v624 = vld [vmem:[%s514 + $0x8] sm:$0xf]
        %v625 = vld [vmem:[%s514 + $0xc] sm:$0xf]
        %v626 = vld [vmem:[%s2] sm:$0xf]
        %v627 = vld [vmem:[%s2 + $0x4] sm:$0xf]
        %v632 = vunpack.c.l.b16 %v622
        %v633 = vunpack.c.l.b16 %v623
        %v634 = vunpack.c.l.b16 %v624
        %v635 = vunpack.c.l.b16 %v625
        %v636 = vpack.c.b16 %v633, %v632
        %v637 = vpack.c.b16 %v635, %v634
        %v640 = vunpack.c.l.b16 %v626
        %v641 = vunpack.c.l.b16 %v627
        %v642 = vpack.c.b16 %v641, %v640
        %vm644 = vcmask 130048
        %v646 = vsel %vm644, %v636, 0
        %v649 = vsel %vm644, %v637, 0
        %651 = vmatpush.bf16.msra.mxu0 0
        %652 = vmatpush.bf16.msra.mxu0 0
        %653 = vmatpush.bf16.msra.mxu0 0
        %654 = vmatpush.bf16.msra.mxu0 0
        %655 = vmatpush.bf16.msra.mxu0 0
        %656 = vmatpush.bf16.msra.mxu0 0
        %657 = vmatpush.bf16.msra.mxu0 0
        %658 = vmatpush.bf16.msra.mxu0 %v642
        %659 = vmatmul.bf16.gmra.mxu0 %v646
        %v660 = vpop.f32.mrf.mxu0
        %v661 = vadd.f32 0.0, %v660
        %v662 = vpop.f32.mrf.mxu0
        %v663 = vadd.f32 0.0, %v662
        %664 = vmatmul.bf16.gmra.mxu0 %v649
        %v665 = vpop.f32.mrf.mxu0
        %v666 = vadd.f32 0.0, %v665
        %v667 = vpop.f32.mrf.mxu0
        %v668 = vadd.f32 0.0, %v667
        %669 = vdwg.mxu0
        %v670 = vadd.f32 %v661, %v618
        %v671 = vadd.f32 %v663, %v620
        %v672 = vadd.f32 %v666, %v618
        %v673 = vadd.f32 %v668, %v620
        %v674 = vld [vmem:[%s4] sm:$0x1]
        %v676 = vperm.slane %v674, 0
        %v678 = vadd.f32 %v670, %v676
        %v679 = vadd.f32 %v671, %v676
        %v680 = vadd.f32 %v672, %v676
        %v681 = vadd.f32 %v673, %v676
        %v682 = vmax.f32 %v678, 0.0
        %v683 = vmax.f32 %v679, 0.0
        %v684 = vmax.f32 %v680, 0.0
        %v685 = vmax.f32 %v681, 0.0
        %v686 = vpack.c.bf16 %v682, %v682
        %v687 = vpack.c.bf16 %v683, %v683
        %v688 = vpack.c.bf16 %v684, %v684
        %v689 = vpack.c.bf16 %v685, %v685
        %v690 = vld [vmem:[%s5] sm:$0xf]
        %v691 = vld [vmem:[%s5 + $0x4] sm:$0xf]
        %v692 = vld [vmem:[%s5 + $0x8] sm:$0xf]
        %v693 = vld [vmem:[%s5 + $0xc] sm:$0xf]
        %v694 = vld [vmem:[%s5 + $0x10] sm:$0xf]
        %v695 = vld [vmem:[%s5 + $0x14] sm:$0xf]
        %v696 = vld [vmem:[%s5 + $0x18] sm:$0xf]
        %v697 = vld [vmem:[%s5 + $0x1c] sm:$0xf]
        %v698 = vld [vmem:[%s6] sm:$0x1]
        %v700 = vperm.slane %v698, 0
        %v706 = vunpack.c.l.b16 %v686
        %v707 = vunpack.c.l.b16 %v687
        %v708 = vunpack.c.l.b16 %v688
        %v709 = vunpack.c.l.b16 %v689
        %v710 = vpack.c.b16 %v707, %v706
        %v711 = vpack.c.b16 %v709, %v708
        %v720 = vunpack.c.l.b16 %v690
        %v721 = vunpack.c.l.b16 %v691
        %v722 = vunpack.c.l.b16 %v692
        %v723 = vunpack.c.l.b16 %v693
        %v724 = vunpack.c.l.b16 %v694
        %v725 = vunpack.c.l.b16 %v695
        %v726 = vunpack.c.l.b16 %v696
        %v727 = vunpack.c.l.b16 %v697
        %v728 = vpack.c.b16 %v721, %v720
        %v729 = vpack.c.b16 %v723, %v722
        %v730 = vpack.c.b16 %v725, %v724
        %v731 = vpack.c.b16 %v727, %v726
        %vm736 = vcmask 523264
        %v738 = vsel %vm736, %v710, 0
        %v741 = vsel %vm736, %v711, 0
        %743 = vmatpush.bf16.msra.mxu0 0
        %744 = vmatpush.bf16.msra.mxu0 0
        %745 = vmatpush.bf16.msra.mxu0 0
        %746 = vmatpush.bf16.msra.mxu0 0
        %747 = vmatpush.bf16.msra.mxu0 %v731
        %748 = vmatpush.bf16.msra.mxu0 %v730
        %749 = vmatpush.bf16.msra.mxu0 %v729
        %750 = vmatpush.bf16.msra.mxu0 %v728
        %751 = vmatmul.bf16.gmra.mxu0 %v738
        %v752 = vpop.f32.mrf.mxu0
        %v753 = vadd.f32 %v700, %v752
        %v754 = vpop.f32.mrf.mxu0
        %v755 = vadd.f32 %v700, %v754
        %756 = vmatmul.bf16.gmra.mxu0 %v741
        %v757 = vpop.f32.mrf.mxu0
        %v758 = vadd.f32 %v700, %v757
        %v759 = vpop.f32.mrf.mxu0
        %v760 = vadd.f32 %v700, %v759
        %761 = vdwg.mxu0
        %v762 = vmax.f32 %v753, 0.0
        %v763 = vmax.f32 %v755, 0.0
        %v764 = vmax.f32 %v758, 0.0
        %v765 = vmax.f32 %v760, 0.0
        %v766 = vpack.c.bf16 %v763, %v762
        %v767 = vpack.c.bf16 %v765, %v764
        %v768 = vld [vmem:[%s7] sm:$0xf]
        %v769 = vld [vmem:[%s7 + $0x4] sm:$0xf]
        %v770 = vld [vmem:[%s7 + $0x8] sm:$0xf]
        %v771 = vld [vmem:[%s7 + $0xc] sm:$0xf]
        %v772 = vld [vmem:[%s8] sm:$0xf]
        %v773 = vld [vmem:[%s8 + $0x4] sm:$0xf]
        %v774 = vld [vmem:[%s8 + $0x8] sm:$0xf]
        %v775 = vld [vmem:[%s8 + $0xc] sm:$0xf]
        %v780 = vunpack.c.l.b16 %v772
        %v781 = vunpack.c.l.b16 %v773
        %v782 = vunpack.c.l.b16 %v774
        %v783 = vunpack.c.l.b16 %v775
        %v784 = vpack.c.b16 %v781, %v780
        %v785 = vpack.c.b16 %v783, %v782
        %vm788 = vcmask 261120
        %v790 = vsel %vm788, %v767, 0
        %792 = vmatpush.bf16.msra.mxu0 0
        %793 = vmatpush.bf16.msra.mxu0 0
        %794 = vmatpush.bf16.msra.mxu0 0
        %795 = vmatpush.bf16.msra.mxu0 0
        %796 = vmatpush.bf16.msra.mxu0 0
        %797 = vmatpush.bf16.msra.mxu0 0
        %798 = vmatpush.bf16.msra.mxu0 %v785
        %799 = vmatpush.bf16.msra.mxu0 %v784
        %800 = vmatmul.bf16.gmra.mxu0 %v790
        %v801 = vpop.f32.mrf.mxu0
        %v802 = vadd.f32 0.0, %v801
        %v803 = vpop.f32.mrf.mxu0
        %v804 = vadd.f32 0.0, %v803
        %805 = vdwg.mxu0
        %v810 = vunpack.c.l.b16 %v768
        %v811 = vunpack.c.l.b16 %v769
        %v812 = vunpack.c.l.b16 %v770
        %v813 = vunpack.c.l.b16 %v771
        %v814 = vpack.c.b16 %v811, %v810
        %v815 = vpack.c.b16 %v813, %v812
        %v819 = vsel %vm788, %v766, 0
        %821 = vmatpush.bf16.msra.mxu0 0
        %822 = vmatpush.bf16.msra.mxu0 0
        %823 = vmatpush.bf16.msra.mxu0 0
        %824 = vmatpush.bf16.msra.mxu0 0
        %825 = vmatpush.bf16.msra.mxu0 0
        %826 = vmatpush.bf16.msra.mxu0 0
        %827 = vmatpush.bf16.msra.mxu0 %v815
        %828 = vmatpush.bf16.msra.mxu0 %v814
        %829 = vmatmul.bf16.gmra.mxu0 %v819
        %v830 = vpop.f32.mrf.mxu0
        %v831 = vadd.f32 %v802, %v830
        %v832 = vpop.f32.mrf.mxu0
        %v833 = vadd.f32 %v804, %v832
        %834 = vdwg.mxu0
        %v835 = vld [vmem:[%s9] sm:$0x1]
        %v837 = vperm.slane %v835, 0
        %v839 = vadd.f32 %v831, %v837
        %v840 = vadd.f32 %v833, %v837
        %v841 = vmax.f32 %v839, 0.0
        %v842 = vmax.f32 %v840, 0.0
        %v843 = vpack.c.bf16 %v842, %v841
        %v844 = vld [vmem:[#allocation3] sm:$0xff]
        %v845 = vld [vmem:[#allocation3 + $0x8] sm:$0xff]
        %v846 = vld [vmem:[#allocation3 + $0x10] sm:$0xff]
        %v847 = vld [vmem:[#allocation3 + $0x18] sm:$0xff]
        %v848 = vld [vmem:[#allocation3 + $0x20] sm:$0xff]
        %v849 = vld [vmem:[#allocation3 + $0x28] sm:$0xff]
        %v850 = vld [vmem:[#allocation3 + $0x30] sm:$0xff]
        %v851 = vld [vmem:[#allocation3 + $0x38] sm:$0xff]
        %v852 = vld [vmem:[#allocation3 + $0x40] sm:$0xff]
        %v853 = vld [vmem:[#allocation3 + $0x48] sm:$0xff]
        %v854 = vld [vmem:[#allocation3 + $0x50] sm:$0xff]
        %v855 = vld [vmem:[#allocation3 + $0x58] sm:$0xff]
        %v856 = vld [vmem:[#allocation3 + $0x60] sm:$0xff]
        %v857 = vld [vmem:[#allocation3 + $0x68] sm:$0xff]
        %v858 = vld [vmem:[#allocation3 + $0x70] sm:$0xff]
        %v859 = vld [vmem:[#allocation3 + $0x78] sm:$0xff]
        %v860 = vld [vmem:[%s11] sm:$0x3]
        %v862 = vperm.slane %v860, 0
        %v863 = vperm.slane %v860, 1
        %v882 = vunpack.c.l.b16 %v844
        %v883 = vunpack.c.h.b16 %v844
        %v884 = vunpack.c.l.b16 %v845
        %v885 = vunpack.c.h.b16 %v845
        %v886 = vunpack.c.l.b16 %v846
        %v887 = vunpack.c.h.b16 %v846
        %v888 = vunpack.c.l.b16 %v847
        %v889 = vunpack.c.h.b16 %v847
        %v890 = vunpack.c.l.b16 %v848
        %v891 = vunpack.c.h.b16 %v848
        %v892 = vunpack.c.l.b16 %v849
        %v893 = vunpack.c.h.b16 %v849
        %v894 = vunpack.c.l.b16 %v850
        %v895 = vunpack.c.h.b16 %v850
        %v896 = vunpack.c.l.b16 %v851
        %v897 = vunpack.c.h.b16 %v851
        %v898 = vunpack.c.l.b16 %v852
        %v899 = vunpack.c.h.b16 %v852
        %v900 = vunpack.c.l.b16 %v853
        %v901 = vunpack.c.h.b16 %v853
        %v902 = vunpack.c.l.b16 %v854
        %v903 = vunpack.c.h.b16 %v854
        %v904 = vunpack.c.l.b16 %v855
        %v905 = vunpack.c.h.b16 %v855
        %v906 = vunpack.c.l.b16 %v856
        %v907 = vunpack.c.h.b16 %v856
        %v908 = vunpack.c.l.b16 %v857
        %v909 = vunpack.c.h.b16 %v857
        %v910 = vunpack.c.l.b16 %v858
        %v911 = vunpack.c.h.b16 %v858
        %v912 = vunpack.c.l.b16 %v859
        %v913 = vunpack.c.h.b16 %v859
        %v914 = vpack.c.b16 %v884, %v882
        %v915 = vpack.c.b16 %v885, %v883
        %v916 = vpack.c.b16 %v888, %v886
        %v917 = vpack.c.b16 %v889, %v887
        %v918 = vpack.c.b16 %v892, %v890
        %v919 = vpack.c.b16 %v893, %v891
        %v920 = vpack.c.b16 %v896, %v894
        %v921 = vpack.c.b16 %v897, %v895
        %v922 = vpack.c.b16 %v900, %v898
        %v923 = vpack.c.b16 %v901, %v899
        %v924 = vpack.c.b16 %v904, %v902
        %v925 = vpack.c.b16 %v905, %v903
        %v926 = vpack.c.b16 %v908, %v906
        %v927 = vpack.c.b16 %v909, %v907
        %v928 = vpack.c.b16 %v912, %v910
        %v929 = vpack.c.b16 %v913, %v911
        %946 = vmatpush.bf16.msra.mxu0 %v928
        %947 = vmatpush.bf16.msra.mxu0 %v926
        %948 = vmatpush.bf16.msra.mxu0 %v924
        %949 = vmatpush.bf16.msra.mxu0 %v922
        %950 = vmatpush.bf16.msra.mxu0 %v920
        %951 = vmatpush.bf16.msra.mxu0 %v918
        %952 = vmatpush.bf16.msra.mxu0 %v916
        %953 = vmatpush.bf16.msra.mxu0 %v914
        %954 = vmatmul.bf16.gmra.mxu0 %v843
        %v955 = vpop.f32.mrf.mxu0
        %v956 = vadd.f32 %v862, %v955
        %v957 = vpop.f32.mrf.mxu0
        %v958 = vadd.f32 %v862, %v957
        %959 = vdwg.mxu0
        %960 = vmatpush.bf16.msra.mxu0 %v929
        %961 = vmatpush.bf16.msra.mxu0 %v927
        %962 = vmatpush.bf16.msra.mxu0 %v925
        %963 = vmatpush.bf16.msra.mxu0 %v923
        %964 = vmatpush.bf16.msra.mxu0 %v921
        %965 = vmatpush.bf16.msra.mxu0 %v919
        %966 = vmatpush.bf16.msra.mxu0 %v917
        %967 = vmatpush.bf16.msra.mxu0 %v915
        %968 = vmatmul.bf16.gmra.mxu0 %v843
        %v969 = vpop.f32.mrf.mxu0
        %v970 = vadd.f32 %v863, %v969
        %v971 = vpop.f32.mrf.mxu0
        %v972 = vadd.f32 %v863, %v971
        %973 = vdwg.mxu0
        %v974 = vmax.f32 %v956, 0.0
        %v975 = vmax.f32 %v970, 0.0
        %v976 = vmax.f32 %v958, 0.0
        %v977 = vmax.f32 %v972, 0.0
        %v978 = vpack.c.bf16 %v976, %v974
        %v979 = vpack.c.bf16 %v977, %v975
        %v980 = vld [vmem:[#allocation6] sm:$0xf]
        %v981 = vld [vmem:[#allocation6 + $0x4] sm:$0xf]
        %v982 = vld [vmem:[#allocation6 + $0x8] sm:$0xf]
        %v983 = vld [vmem:[#allocation6 + $0xc] sm:$0xf]
        %v984 = vld [vmem:[#allocation6 + $0x10] sm:$0xf]
        %v985 = vld [vmem:[#allocation6 + $0x14] sm:$0xf]
        %v986 = vld [vmem:[#allocation6 + $0x18] sm:$0xf]
        %v987 = vld [vmem:[#allocation6 + $0x1c] sm:$0xf]
        %v988 = vld [vmem:[#allocation6 + $0x20] sm:$0xf]
        %v989 = vld [vmem:[#allocation6 + $0x24] sm:$0xf]
        %v990 = vld [vmem:[#allocation6 + $0x28] sm:$0xf]
        %v991 = vld [vmem:[#allocation6 + $0x2c] sm:$0xf]
        %v992 = vld [vmem:[#allocation6 + $0x30] sm:$0xf]
        %v993 = vld [vmem:[#allocation6 + $0x34] sm:$0xf]
        %v994 = vld [vmem:[#allocation6 + $0x38] sm:$0xf]
        %v995 = vld [vmem:[#allocation6 + $0x3c] sm:$0xf]
        %v996 = vld [vmem:[#allocation6 + $0x40] sm:$0xf]
        %v997 = vld [vmem:[#allocation6 + $0x44] sm:$0xf]
        %v998 = vld [vmem:[#allocation6 + $0x48] sm:$0xf]
        %v999 = vld [vmem:[#allocation6 + $0x4c] sm:$0xf]
        %v1000 = vld [vmem:[#allocation6 + $0x50] sm:$0xf]
        %v1001 = vld [vmem:[#allocation6 + $0x54] sm:$0xf]
        %v1002 = vld [vmem:[#allocation6 + $0x58] sm:$0xf]
        %v1003 = vld [vmem:[#allocation6 + $0x5c] sm:$0xf]
        %v1004 = vld [vmem:[#allocation6 + $0x60] sm:$0xf]
        %v1005 = vld [vmem:[#allocation6 + $0x64] sm:$0xf]
        %v1006 = vld [vmem:[#allocation6 + $0x68] sm:$0xf]
        %v1007 = vld [vmem:[#allocation6 + $0x6c] sm:$0xf]
        %v1008 = vld [vmem:[#allocation6 + $0x70] sm:$0xf]
        %v1009 = vld [vmem:[#allocation6 + $0x74] sm:$0xf]
        %v1010 = vld [vmem:[#allocation6 + $0x78] sm:$0xf]
        %v1011 = vld [vmem:[#allocation6 + $0x7c] sm:$0xf]
        %v1012 = vld [vmem:[%s13] sm:$0x1]
        %v1014 = vperm.slane %v1012, 0
        %v1048 = vunpack.c.l.b16 %v980
        %v1049 = vunpack.c.l.b16 %v981
        %v1050 = vunpack.c.l.b16 %v982
        %v1051 = vunpack.c.l.b16 %v983
        %v1052 = vunpack.c.l.b16 %v984
        %v1053 = vunpack.c.l.b16 %v985
        %v1054 = vunpack.c.l.b16 %v986
        %v1055 = vunpack.c.l.b16 %v987
        %v1056 = vunpack.c.l.b16 %v988
        %v1057 = vunpack.c.l.b16 %v989
        %v1058 = vunpack.c.l.b16 %v990
        %v1059 = vunpack.c.l.b16 %v991
        %v1060 = vunpack.c.l.b16 %v992
        %v1061 = vunpack.c.l.b16 %v993
        %v1062 = vunpack.c.l.b16 %v994
        %v1063 = vunpack.c.l.b16 %v995
        %v1064 = vunpack.c.l.b16 %v996
        %v1065 = vunpack.c.l.b16 %v997
        %v1066 = vunpack.c.l.b16 %v998
        %v1067 = vunpack.c.l.b16 %v999
        %v1068 = vunpack.c.l.b16 %v1000
        %v1069 = vunpack.c.l.b16 %v1001
        %v1070 = vunpack.c.l.b16 %v1002
        %v1071 = vunpack.c.l.b16 %v1003
        %v1072 = vunpack.c.l.b16 %v1004
        %v1073 = vunpack.c.l.b16 %v1005
        %v1074 = vunpack.c.l.b16 %v1006
        %v1075 = vunpack.c.l.b16 %v1007
        %v1076 = vunpack.c.l.b16 %v1008
        %v1077 = vunpack.c.l.b16 %v1009
        %v1078 = vunpack.c.l.b16 %v1010
        %v1079 = vunpack.c.l.b16 %v1011
        %v1080 = vpack.c.b16 %v1049, %v1048
        %v1081 = vpack.c.b16 %v1051, %v1050
        %v1082 = vpack.c.b16 %v1053, %v1052
        %v1083 = vpack.c.b16 %v1055, %v1054
        %v1084 = vpack.c.b16 %v1057, %v1056
        %v1085 = vpack.c.b16 %v1059, %v1058
        %v1086 = vpack.c.b16 %v1061, %v1060
        %v1087 = vpack.c.b16 %v1063, %v1062
        %v1088 = vpack.c.b16 %v1065, %v1064
        %v1089 = vpack.c.b16 %v1067, %v1066
        %v1090 = vpack.c.b16 %v1069, %v1068
        %v1091 = vpack.c.b16 %v1071, %v1070
        %v1092 = vpack.c.b16 %v1073, %v1072
        %v1093 = vpack.c.b16 %v1075, %v1074
        %v1094 = vpack.c.b16 %v1077, %v1076
        %v1095 = vpack.c.b16 %v1079, %v1078
        %1112 = vmatpush.bf16.msra.mxu0 %v1087
        %1113 = vmatpush.bf16.msra.mxu0 %v1086
        %1114 = vmatpush.bf16.msra.mxu0 %v1085
        %1115 = vmatpush.bf16.msra.mxu0 %v1084
        %1116 = vmatpush.bf16.msra.mxu0 %v1083
        %1117 = vmatpush.bf16.msra.mxu0 %v1082
        %1118 = vmatpush.bf16.msra.mxu0 %v1081
        %1119 = vmatpush.bf16.msra.mxu0 %v1080
        %1120 = vmatmul.bf16.gmra.mxu0 %v978
        %v1121 = vpop.f32.mrf.mxu0
        %v1122 = vadd.f32 %v1014, %v1121
        %v1123 = vpop.f32.mrf.mxu0
        %v1124 = vadd.f32 %v1014, %v1123
        %1125 = vdwg.mxu0
        %1126 = vmatpush.bf16.msra.mxu0 %v1095
        %1127 = vmatpush.bf16.msra.mxu0 %v1094
        %1128 = vmatpush.bf16.msra.mxu0 %v1093
        %1129 = vmatpush.bf16.msra.mxu0 %v1092
        %1130 = vmatpush.bf16.msra.mxu0 %v1091
        %1131 = vmatpush.bf16.msra.mxu0 %v1090
        %1132 = vmatpush.bf16.msra.mxu0 %v1089
        %1133 = vmatpush.bf16.msra.mxu0 %v1088
        %1134 = vmatmul.bf16.gmra.mxu0 %v979
        %v1135 = vpop.f32.mrf.mxu0
        %v1136 = vadd.f32 %v1122, %v1135
        %v1137 = vpop.f32.mrf.mxu0
        %v1138 = vadd.f32 %v1124, %v1137
        %1139 = vdwg.mxu0
        %v1140 = vpack.c.bf16 %v1136, %v1136
        %v1141 = vpack.c.bf16 %v1138, %v1138
        %1142 = vst [vmem:[%s571] sm:$0xf] %v1140
        %1143 = vst [vmem:[%s571 + $0x4] sm:$0xf] %v1141
        %s1144 = sand.u32 %s342, 1
        %s1145 = scalar_lea.sflag [#allocation5], %s1144
        %s1146 = sand.u32 %s342, 1
        %s1147 = smul.addr %s1146, 8
        %s1148 = scalar_lea.vmem [#allocation8], %s1147
        // Predicated region
        $region126: #{tpu_custom_call.1} parent=112 // pred_check
          %p1149 = pneg %p352
        $region127: #{tpu_custom_call.1} parent=112 // pred_check_branch
          %1151 = sbr.rel (%p1149) target = $region129
        $region128: #{tpu_custom_call.1} parent=112 // pred_region
          %s1152 = smul.u32 2, %s30
          %1154 = vsyncadd %s1145, 0
          %s1155 = smul.addr %s1152, 4
          %s1156 = scalar_lea.hbm %s14, %s1155
          %s1157 = sshll.u32 %s1148, 4
          %s1158 = int_to_ptr.vmem [resolvable:$true] %s1157
          %s1159 = sshll.u32 %s1156, 4
          %s1160 = int_to_ptr.hbm [resolvable:$true] %s1159
          %1165 = dma.vmem_to_hbm [thread:$0]  %s1158, 128, %s1160, %s1145, 64, 64, 4
        $region129: #{tpu_custom_call.1} parent=112 // pred_fallthru
          _
      $region113: #{tpu_custom_call.1} parent=5 // pred_fallthru
        _
      %p1166 = scmp.le.s32.totalorder 2, %s25
      // Predicated region
      $region130: #{tpu_custom_call.1} parent=5 // pred_check
        %p1167 = pneg %p1166
      $region131: #{tpu_custom_call.1} parent=5 // pred_check_branch
        %1169 = sbr.rel (%p1167) target = $region133
      $region132: #{tpu_custom_call.1} parent=5 // pred_region
        %s1170 = ssub.s32 %s25, 2
        // Predicated region
        $region134: #{tpu_custom_call.1} parent=132 // pred_check
          %p1171 = pneg %p358
        $region135: #{tpu_custom_call.1} parent=132 // pred_check_branch
          %1173 = sbr.rel (%p1171) target = $region137
        $region136: #{tpu_custom_call.1} parent=132 // pred_region
          %s1174 = sand.u32 %s343, 1
          %s1175 = scalar_lea.sflag [#allocation5], %s1174
          %s1176 = sand.u32 %s343, 1
          %s1177 = smul.addr %s1176, 8
          %s1178 = scalar_lea.vmem [#allocation8], %s1177
          %1180 = dma.done %s1175, 128
        $region137: #{tpu_custom_call.1} parent=132 // pred_fallthru
          _
      $region133: #{tpu_custom_call.1} parent=5 // pred_fallthru
        _
    $region6: #{tpu_custom_call.1} parent=1 // loop_footer
      %s29 = sadd.s32 1, %s25
    $region7: #{tpu_custom_call.1} parent=1 // loop_footer_branch
      %24 = sbr.rel target = $region3
    $region8: #{tpu_custom_call.1} parent=1 // loop_exit
      _
    %1181 = vsyncpa [#allocation4], 1
    %s1182 = scalar_lea.sflag [#allocation4], 1
    %1183 = vsyncpa %s1182, 1
    %1184 = vsyncpa [#allocation7], 1
    %1185 = vsyncpa [#allocation5], 1
    %s1186 = scalar_lea.sflag [#allocation5], 1
    %1187 = vsyncpa %s1186, 1

</llo_original>
